<compile_context>
chip_gen: v7x
topology: tpu7x:2x2x1
jax: 0.10.0
libtpu: 0.0.40
codegen_flags: <defaults>
</compile_context>

<pallas_src>
import functools

import jax
import jax.numpy as jnp
from jax.experimental import pallas as pl
from jax.experimental.pallas import tpu as pltpu


def _round_up(x, m):
    return ((x + m - 1) // m) * m


def _pick_block_b(batch, requested):
    """Batch tile: multiple of 128; try to keep >= 2 tiles (v7x megacore)."""
    blk = max(128, (int(requested) // 128) * 128)
    half = _round_up(max(1, (batch + 1) // 2), 128)
    return min(blk, half)


def _full_spec(shape):
    return pl.BlockSpec(shape, lambda i: tuple(0 for _ in shape))


def _mlp_kernel(x_ref, w1_ref, b1_ref, w2_ref, b2_ref,
                w3_ref, b3_ref, w4_ref, b4_ref, o_ref):
    # fc1 + ReLU  (matmul operands may be bf16; always accumulate in f32)
    h = jnp.dot(x_ref[...], w1_ref[...], preferred_element_type=jnp.float32)
    h = jnp.maximum(h + b1_ref[...], 0.0)
    # fc2 + ReLU
    h = jnp.dot(h.astype(w2_ref.dtype), w2_ref[...],
                preferred_element_type=jnp.float32)
    h = jnp.maximum(h + b2_ref[...], 0.0)
    # fc3 + ReLU
    h = jnp.dot(h.astype(w3_ref.dtype), w3_ref[...],
                preferred_element_type=jnp.float32)
    h = jnp.maximum(h + b3_ref[...], 0.0)
    # fc4 (64 -> 1): contract the feature dim of h against the single weight
    # column stored as a (1, 64) row.  Result is a lane-dense (1, block_b) row
    # (like q @ k.T), so the final store is a full unmasked vector store
    # instead of a lane-width-1 masked one.
    z = jax.lax.dot_general(
        w4_ref[...], h.astype(w4_ref.dtype),
        dimension_numbers=(((1,), (1,)), ((), ())),
        preferred_element_type=jnp.float32)              # (1, block_b)
    z = z + b4_ref[...]                                  # (1, 1) broadcast
    # Elementwise epilogue kept in f32 (v5e VPU/EUP have no bf16 path).
    o_ref[...] = (1.0 / (1.0 + jnp.exp(-z))).astype(o_ref.dtype)


@functools.partial(jax.jit, static_argnames=("block_b", "matmul_dtype"))
def fcnn_forward(x, params, *, block_b=512, matmul_dtype=jnp.bfloat16):
    """x: [B, D] float32.  params: transposed weights (in, out) + (1, out) biases.

    Returns sigmoid scores of shape [B, 1] in float32.
    """
    B, D = x.shape

    blk = _pick_block_b(B, block_b)
    B_pad = _round_up(B, blk)
    D_pad = _round_up(D, 128)

    itemsize = jnp.dtype(matmul_dtype).itemsize

    # Zero-pad batch and feature dims; pad rows/cols contribute nothing to x@W1.
    xp = jnp.pad(x, ((0, B_pad - B), (0, D_pad - D))).astype(matmul_dtype)

    w1 = jnp.pad(params["w1"], ((0, D_pad - D), (0, 0))).astype(matmul_dtype)
    w2 = params["w2"].astype(matmul_dtype)                       # (256, 128)
    w3 = params["w3"].astype(matmul_dtype)                       # (128, 64)
    w4 = params["w4"].reshape(1, -1).astype(matmul_dtype)        # (1, 64) row
    b1 = params["b1"].astype(jnp.float32)                        # (1, 256)
    b2 = params["b2"].astype(jnp.float32)                        # (1, 128)
    b3 = params["b3"].astype(jnp.float32)                        # (1, 64)
    b4 = params["b4"].astype(jnp.float32)                        # (1, 1)

    grid = (B_pad // blk,)

    # Rough VMEM budget: double-buffered x tile + double-buffered out row +
    # resident weights/biases + activation temporaries; clamp to a safe range
    # (well under v7x's 64 MiB physical VMEM).
    vmem_bytes = (
        2 * blk * D_pad * itemsize                # x double-buffer
        + 2 * blk * 4                             # out double-buffer
        + (D_pad * 256 + 256 * 128 + 128 * 64 + 64) * itemsize   # weights
        + (256 + 128 + 64 + 1) * 4                # biases
        + 4 * blk * 256 * 4                       # f32 activation temporaries
    )
    vmem_limit = min(max(2 * vmem_bytes, 16 * 1024 * 1024), 48 * 1024 * 1024)

    out = pl.pallas_call(
        _mlp_kernel,
        out_shape=jax.ShapeDtypeStruct((1, B_pad), jnp.float32),
        grid_spec=pltpu.PrefetchScalarGridSpec(
            num_scalar_prefetch=0,
            grid=grid,
            in_specs=[
                pl.BlockSpec((blk, D_pad), lambda i: (i, 0)),   # x tile
                _full_spec(w1.shape), _full_spec(b1.shape),
                _full_spec(w2.shape), _full_spec(b2.shape),
                _full_spec(w3.shape), _full_spec(b3.shape),
                _full_spec(w4.shape), _full_spec(b4.shape),
            ],
            # Lane-dense output slab: one (1, blk) row block per grid step.
            out_specs=pl.BlockSpec((1, blk), lambda i: (0, i)),
        ),
        compiler_params=pltpu.CompilerParams(
            dimension_semantics=("parallel",),
            vmem_limit_bytes=int(vmem_limit),
        ),
    )(xp, w1, b1, w2, b2, w3, b3, w4, b4)

    # (1, B_pad) row slab -> (B, 1) column, dropping batch padding.
    return out.reshape(B_pad, 1)[:B]


def init_params(key, input_dimension):
    """Deterministic init mimicking nn.Linear default (uniform +/- 1/sqrt(fan_in)).
    Weights are stored transposed: [in_features, out_features]."""
    dims = [input_dimension, 256, 128, 64, 1]
    params = {}
    for idx in range(4):
        fan_in, fan_out = dims[idx], dims[idx + 1]
        key, kw, kb = jax.random.split(key, 3)
        bound = 1.0 / (fan_in ** 0.5)
        params[f"w{idx + 1}"] = jax.random.uniform(
            kw, (fan_in, fan_out), jnp.float32, -bound, bound)
        params[f"b{idx + 1}"] = jax.random.uniform(
            kb, (1, fan_out), jnp.float32, -bound, bound)
    return params


def fcnn_reference(x, params):
    h = jnp.maximum(x @ params["w1"] + params["b1"], 0.0)
    h = jnp.maximum(h @ params["w2"] + params["b2"], 0.0)
    h = jnp.maximum(h @ params["w3"] + params["b3"], 0.0)
    z = h @ params["w4"] + params["b4"]
    return jax.nn.sigmoid(z)


if __name__ == "__main__":
    key = jax.random.PRNGKey(0)
    k_params, k_x = jax.random.split(key)

    input_dimension = 32
    batch = 512

    params = init_params(k_params, input_dimension)
    x = jax.random.normal(k_x, (batch, input_dimension), jnp.float32)

    ref = fcnn_reference(x, params)

    # Exact path: f32 matmul operands.
    out_f32 = jax.block_until_ready(
        fcnn_forward(x, params, block_b=256, matmul_dtype=jnp.float32))
    assert out_f32.shape == (batch, 1), out_f32.shape
    assert jnp.allclose(out_f32, ref, atol=1e-5, rtol=1e-5)

    # Fast path: bf16 matmul operands, f32 accumulation/epilogue (v6e/v7x MXU).
    out_bf16 = jax.block_until_ready(
        fcnn_forward(x, params, block_b=256, matmul_dtype=jnp.bfloat16))
    assert out_bf16.shape == (batch, 1), out_bf16.shape
    assert jnp.allclose(out_bf16, ref, atol=2e-2, rtol=2e-2)

    print("KERNEL_OK")
</pallas_src>

<mosaic_0001>
module attributes {stable_mosaic.version = 11 : i64} {
  func.func @_mlp_kernel(%arg0: i32, %arg1: memref<256x128xf32, #tpu.memory_space<vmem>>, %arg2: memref<128x256xf32, #tpu.memory_space<vmem>>, %arg3: memref<1x256xf32, #tpu.memory_space<vmem>>, %arg4: memref<256x128xf32, #tpu.memory_space<vmem>>, %arg5: memref<1x128xf32, #tpu.memory_space<vmem>>, %arg6: memref<128x64xf32, #tpu.memory_space<vmem>>, %arg7: memref<1x64xf32, #tpu.memory_space<vmem>>, %arg8: memref<1x64xf32, #tpu.memory_space<vmem>>, %arg9: memref<1x1xf32, #tpu.memory_space<vmem>>, %arg10: memref<1x256xf32, #tpu.memory_space<vmem>>) attributes {dimension_semantics = [#tpu.dimension_semantics<parallel>], iteration_bounds = array<i64: 2>, scalar_prefetch = 0 : i64, scratch_operands = 0 : i64, tpu.core_type = #tpu.core_type<tc>, window_params = [{transform_indices = @transform_0, window_bounds = array<i64: 256, 128>}, {pipeline_mode = #tpu.pipeline_mode<synchronous>, transform_indices = @transform_1, window_bounds = array<i64: 128, 256>}, {pipeline_mode = #tpu.pipeline_mode<synchronous>, transform_indices = @transform_2, window_bounds = array<i64: 1, 256>}, {pipeline_mode = #tpu.pipeline_mode<synchronous>, transform_indices = @transform_3, window_bounds = array<i64: 256, 128>}, {pipeline_mode = #tpu.pipeline_mode<synchronous>, transform_indices = @transform_4, window_bounds = array<i64: 1, 128>}, {pipeline_mode = #tpu.pipeline_mode<synchronous>, transform_indices = @transform_5, window_bounds = array<i64: 128, 64>}, {pipeline_mode = #tpu.pipeline_mode<synchronous>, transform_indices = @transform_6, window_bounds = array<i64: 1, 64>}, {pipeline_mode = #tpu.pipeline_mode<synchronous>, transform_indices = @transform_7, window_bounds = array<i64: 1, 64>}, {pipeline_mode = #tpu.pipeline_mode<synchronous>, transform_indices = @transform_8, window_bounds = array<i64: 1, 1>}, {transform_indices = @transform_9, window_bounds = array<i64: 1, 256>}]} {
    %c0 = arith.constant 0 : index
    %c0_0 = arith.constant 0 : index
    %0 = vector.load %arg1[%c0, %c0_0] : memref<256x128xf32, #tpu.memory_space<vmem>>, vector<256x128xf32>
    %c0_1 = arith.constant 0 : index
    %c0_2 = arith.constant 0 : index
    %1 = vector.load %arg2[%c0_1, %c0_2] : memref<128x256xf32, #tpu.memory_space<vmem>>, vector<128x256xf32>
    %cst = arith.constant dense<0.000000e+00> : vector<256x256xf32>
    %2 = tpu.matmul %0, %1, %cst {dimension_numbers = #tpu.dot_dimension_numbers<[1], [0], [0], [1], [0, 0, 1, 1], [], []>} : vector<256x128xf32>, vector<128x256xf32>, vector<256x256xf32> -> vector<256x256xf32>
    %c0_3 = arith.constant 0 : index
    %c0_4 = arith.constant 0 : index
    %3 = vector.load %arg3[%c0_3, %c0_4] : memref<1x256xf32, #tpu.memory_space<vmem>>, vector<1x256xf32>
    %4 = vector.broadcast %3 : vector<1x256xf32> to vector<256x256xf32>
    %5 = arith.addf %2, %4 : vector<256x256xf32>
    %cst_5 = arith.constant 0.000000e+00 : f32
    %6 = vector.broadcast %cst_5 : f32 to vector<256x256xf32>
    %7 = arith.maximumf %5, %6 : vector<256x256xf32>
    %c0_6 = arith.constant 0 : index
    %c0_7 = arith.constant 0 : index
    %8 = vector.load %arg4[%c0_6, %c0_7] : memref<256x128xf32, #tpu.memory_space<vmem>>, vector<256x128xf32>
    %cst_8 = arith.constant dense<0.000000e+00> : vector<256x128xf32>
    %9 = tpu.matmul %7, %8, %cst_8 {dimension_numbers = #tpu.dot_dimension_numbers<[1], [0], [0], [1], [0, 0, 1, 1], [], []>} : vector<256x256xf32>, vector<256x128xf32>, vector<256x128xf32> -> vector<256x128xf32>
    %c0_9 = arith.constant 0 : index
    %c0_10 = arith.constant 0 : index
    %10 = vector.load %arg5[%c0_9, %c0_10] : memref<1x128xf32, #tpu.memory_space<vmem>>, vector<1x128xf32>
    %11 = vector.broadcast %10 : vector<1x128xf32> to vector<256x128xf32>
    %12 = arith.addf %9, %11 : vector<256x128xf32>
    %cst_11 = arith.constant 0.000000e+00 : f32
    %13 = vector.broadcast %cst_11 : f32 to vector<256x128xf32>
    %14 = arith.maximumf %12, %13 : vector<256x128xf32>
    %c0_12 = arith.constant 0 : index
    %c0_13 = arith.constant 0 : index
    %15 = vector.load %arg6[%c0_12, %c0_13] : memref<128x64xf32, #tpu.memory_space<vmem>>, vector<128x64xf32>
    %cst_14 = arith.constant dense<0.000000e+00> : vector<256x64xf32>
    %16 = tpu.matmul %14, %15, %cst_14 {dimension_numbers = #tpu.dot_dimension_numbers<[1], [0], [0], [1], [0, 0, 1, 1], [], []>} : vector<256x128xf32>, vector<128x64xf32>, vector<256x64xf32> -> vector<256x64xf32>
    %c0_15 = arith.constant 0 : index
    %c0_16 = arith.constant 0 : index
    %17 = vector.load %arg7[%c0_15, %c0_16] : memref<1x64xf32, #tpu.memory_space<vmem>>, vector<1x64xf32>
    %18 = vector.broadcast %17 : vector<1x64xf32> to vector<256x64xf32>
    %19 = arith.addf %16, %18 : vector<256x64xf32>
    %cst_17 = arith.constant 0.000000e+00 : f32
    %20 = vector.broadcast %cst_17 : f32 to vector<256x64xf32>
    %21 = arith.maximumf %19, %20 : vector<256x64xf32>
    %c0_18 = arith.constant 0 : index
    %c0_19 = arith.constant 0 : index
    %22 = vector.load %arg8[%c0_18, %c0_19] : memref<1x64xf32, #tpu.memory_space<vmem>>, vector<1x64xf32>
    %cst_20 = arith.constant dense<0.000000e+00> : vector<1x256xf32>
    %23 = tpu.matmul %22, %21, %cst_20 {dimension_numbers = #tpu.dot_dimension_numbers<[1], [1], [0], [0], [0, 0, 1, 0], [], []>} : vector<1x64xf32>, vector<256x64xf32>, vector<1x256xf32> -> vector<1x256xf32>
    %c0_21 = arith.constant 0 : index
    %c0_22 = arith.constant 0 : index
    %24 = vector.load %arg9[%c0_21, %c0_22] : memref<1x1xf32, #tpu.memory_space<vmem>>, vector<1x1xf32>
    %25 = vector.broadcast %24 : vector<1x1xf32> to vector<1x256xf32>
    %26 = arith.addf %23, %25 : vector<1x256xf32>
    %cst_23 = arith.constant 0.000000e+00 : f32
    %27 = vector.broadcast %cst_23 : f32 to vector<1x256xf32>
    %28 = arith.subf %27, %26 : vector<1x256xf32>
    %29 = math.exp %28 : vector<1x256xf32>
    %cst_24 = arith.constant 1.000000e+00 : f32
    %30 = vector.broadcast %cst_24 : f32 to vector<1x256xf32>
    %31 = arith.addf %30, %29 : vector<1x256xf32>
    %cst_25 = arith.constant 1.000000e+00 : f32
    %32 = vector.broadcast %cst_25 : f32 to vector<1x256xf32>
    %33 = arith.divf %32, %31 : vector<1x256xf32>
    %c0_26 = arith.constant 0 : index
    %c0_27 = arith.constant 0 : index
    %34 = vector.load %arg10[%c0_26, %c0_27] : memref<1x256xf32, #tpu.memory_space<vmem>>, vector<1x256xf32>
    tpu.vector_store %arg10[%c0_26, %c0_27], %33 {strides = array<i32>} : memref<1x256xf32, #tpu.memory_space<vmem>>, vector<1x256xf32>,
    return
  }
  func.func @transform_0(%arg0: i32) -> (i32, i32) {
    %c0_i32 = arith.constant 0 : i32
    %c0_i32_0 = arith.constant 0 : i32
    return %arg0, %c0_i32 : i32, i32
  }
  func.func @transform_1(%arg0: i32) -> (i32, i32) {
    %c0_i32 = arith.constant 0 : i32
    %c0_i32_0 = arith.constant 0 : i32
    %c0_i32_1 = arith.constant 0 : i32
    return %c0_i32, %c0_i32_0 : i32, i32
  }
  func.func @transform_2(%arg0: i32) -> (i32, i32) {
    %c0_i32 = arith.constant 0 : i32
    %c0_i32_0 = arith.constant 0 : i32
    %c0_i32_1 = arith.constant 0 : i32
    return %c0_i32, %c0_i32_0 : i32, i32
  }
  func.func @transform_3(%arg0: i32) -> (i32, i32) {
    %c0_i32 = arith.constant 0 : i32
    %c0_i32_0 = arith.constant 0 : i32
    %c0_i32_1 = arith.constant 0 : i32
    return %c0_i32, %c0_i32_0 : i32, i32
  }
  func.func @transform_4(%arg0: i32) -> (i32, i32) {
    %c0_i32 = arith.constant 0 : i32
    %c0_i32_0 = arith.constant 0 : i32
    %c0_i32_1 = arith.constant 0 : i32
    return %c0_i32, %c0_i32_0 : i32, i32
  }
  func.func @transform_5(%arg0: i32) -> (i32, i32) {
    %c0_i32 = arith.constant 0 : i32
    %c0_i32_0 = arith.constant 0 : i32
    %c0_i32_1 = arith.constant 0 : i32
    return %c0_i32, %c0_i32_0 : i32, i32
  }
  func.func @transform_6(%arg0: i32) -> (i32, i32) {
    %c0_i32 = arith.constant 0 : i32
    %c0_i32_0 = arith.constant 0 : i32
    %c0_i32_1 = arith.constant 0 : i32
    return %c0_i32, %c0_i32_0 : i32, i32
  }
  func.func @transform_7(%arg0: i32) -> (i32, i32) {
    %c0_i32 = arith.constant 0 : i32
    %c0_i32_0 = arith.constant 0 : i32
    %c0_i32_1 = arith.constant 0 : i32
    return %c0_i32, %c0_i32_0 : i32, i32
  }
  func.func @transform_8(%arg0: i32) -> (i32, i32) {
    %c0_i32 = arith.constant 0 : i32
    %c0_i32_0 = arith.constant 0 : i32
    %c0_i32_1 = arith.constant 0 : i32
    return %c0_i32, %c0_i32_0 : i32, i32
  }
  func.func @transform_9(%arg0: i32) -> (i32, i32) {
    %c0_i32 = arith.constant 0 : i32
    %c0_i32_0 = arith.constant 0 : i32
    return %c0_i32, %arg0 : i32, i32
  }
}

</mosaic_0001>

<llo_original>
// kernel: fcnn_forward.1
$region0: #{fcnn_forward.1}
  #allocation0 [shape = 'u32[]', space=smem, size = 0x4, offset = 0x4, fixed_abs, tag = 'smem constant byte address 0x4 - core index']
  #allocation1 [shape = 'u32[144,128]{1,0:T(1,128)}', space=vmem, size = 0x12000, scoped, tag = 'internal scratch']
  #allocation2 [shape = 'f32[1,1]{1,0:T(1,128)S(1)}', space=vmem, size = 0x200, scoped, tag = 'scoped memory for fcnn_forward.1']
  %s0 = inlined_call_operand.vmem [shape: f32[512,128], index: 0, kind: input, shape index: {}]
  %s1 = inlined_call_operand.vmem [shape: f32[128,256], index: 1, kind: input, shape index: {}]
  %s2 = inlined_call_operand.vmem [shape: f32[1,256], index: 2, kind: input, shape index: {}]
  %s3 = inlined_call_operand.vmem [shape: f32[256,128], index: 3, kind: input, shape index: {}]
  %s4 = inlined_call_operand.vmem [shape: f32[1,128], index: 4, kind: input, shape index: {}]
  %s5 = inlined_call_operand.vmem [shape: f32[128,64], index: 5, kind: input, shape index: {}]
  %s6 = inlined_call_operand.vmem [shape: f32[1,64], index: 6, kind: input, shape index: {}]
  %s7 = inlined_call_operand.vmem [shape: f32[1,64], index: 7, kind: input, shape index: {}]
  %s8 = inlined_call_operand.<no memory space> [shape: f32[1,1], index: 8, kind: input, shape index: {}]
  %s9 = inlined_call_operand.hbm [shape: f32[1,512], index: 9, kind: output, shape index: {}]
  %s10 = sld [smem:[#allocation0]]
  $region69: #{fcnn_forward.1} parent=0
    _
  %s12 = ssub.s32 1, %s10
  %s13 = scalar_select 0, %s12, %s10
  %v14 = vstv %s8
  %15 = vst [vmem:[#allocation2] sm:$0x1] %v14
  $region1: #{fcnn_forward.1} parent=0
    #allocation3 [shape = 'u8[2048]{0}', space=vmem, size = 0x800, scoped, tag = 'output window, operand 0']
    #allocation4 [shape = 's32[2]{0}', space=sflag, size = 0x8, scoped, tag = 'scoped memory for fcnn_forward.1']
    %16 = vsyncpa [#allocation4], 0
    %s17 = scalar_lea.sflag [#allocation4], 1
    %18 = vsyncpa %s17, 0
    loop: start=0, step=1, limit=4
    $region2: #{fcnn_forward.1} parent=1 // loop_pre_header
      _
    $region3: #{fcnn_forward.1} parent=1 // loop_header
      %s20 = sphi 0, %s24
      %p21 = scmp.ge.s32.totalorder %s20, 4
      %s30 = sphi 0, %s32
      %s33 = sphi 0, %s30
      %s34 = sphi 0, %s33
      %s50 = sphi 0, %s34
      %s54 = sphi 0, %s54
      %s56 = sphi 0, %s54
      %s57 = sphi 0, %s56
      %s71 = sphi 0, %s57
      %s75 = sphi 0, %s75
      %s77 = sphi 0, %s75
      %s78 = sphi 0, %s77
      %s92 = sphi 0, %s78
      %s96 = sphi 0, %s96
      %s98 = sphi 0, %s96
      %s99 = sphi 0, %s98
      %s113 = sphi 0, %s99
      %s117 = sphi 0, %s117
      %s119 = sphi 0, %s117
      %s120 = sphi 0, %s119
      %s134 = sphi 0, %s120
      %s138 = sphi 0, %s138
      %s140 = sphi 0, %s138
      %s141 = sphi 0, %s140
      %s155 = sphi 0, %s141
      %s159 = sphi 0, %s159
      %s161 = sphi 0, %s159
      %s162 = sphi 0, %s161
      %s176 = sphi 0, %s162
      %s180 = sphi 0, %s180
      %s182 = sphi 0, %s180
      %s183 = sphi 0, %s182
      %s197 = sphi 0, %s183
      %s201 = sphi 0, %s201
      %s203 = sphi 0, %s201
      %s204 = sphi 0, %s203
      %s218 = sphi 0, %s204
      %s224 = sphi 0, %s226
      %s227 = sphi 0, %s224
      %s228 = sphi 0, %s227
      %s244 = sphi 0, %s228
    $region4: #{fcnn_forward.1} parent=1 // loop_header_branch
      %23 = sbr.rel (%p21) target = $region8
    $region5: #{fcnn_forward.1} parent=1 // loop_body
      %s25 = ssub.s32 %s20, 1
      %s26 = ssub.s32 %s20, 2
      %s27 = sadd.s32 %s20, 1
      %s28 = ssub.s32 %s20, %s27
      %p29 = scmp.eq.s32.totalorder %s28, 0
      %s31 = sadd.s32 %s30, 1
      %s32 = scalar_select %p29, %s30, %s31
      %p35 = pneg %p29
      %p36 = scmp.eq.s32.totalorder %s20, 1
      %p37 = por %p35, %p36
      %p38 = scmp.ne.s32.totalorder %s30, %s33
      %p39 = scmp.eq.s32.totalorder %s20, 0
      %p40 = por %p38, %p39
      %p41 = scmp.ne.s32.totalorder %s30, %s33
      %p42 = scmp.eq.s32.totalorder %s25, 1
      %p43 = por %p41, %p42
      %p44 = scmp.ne.s32.totalorder %s33, %s34
      %p45 = scmp.eq.s32.totalorder %s25, 0
      %p46 = por %p44, %p45
      %p47 = scmp.ne.s32.totalorder %s33, %s34
      %p48 = scmp.eq.s32.totalorder %s26, 1
      %p49 = por %p47, %p48
      %p51 = scmp.ne.s32.totalorder %s34, %s50
      %p52 = scmp.eq.s32.totalorder %s26, 0
      %p53 = por %p51, %p52
      %s55 = sadd.s32 %s54, 1
      %p58 = scmp.eq.s32.totalorder %s20, 1
      %p59 = scmp.ne.s32.totalorder %s54, %s56
      %p60 = scmp.eq.s32.totalorder %s20, 0
      %p61 = por %p59, %p60
      %p62 = scmp.ne.s32.totalorder %s54, %s56
      %p63 = scmp.eq.s32.totalorder %s25, 1
      %p64 = por %p62, %p63
      %p65 = scmp.ne.s32.totalorder %s56, %s57
      %p66 = scmp.eq.s32.totalorder %s25, 0
      %p67 = por %p65, %p66
      %p68 = scmp.ne.s32.totalorder %s56, %s57
      %p69 = scmp.eq.s32.totalorder %s26, 1
      %p70 = por %p68, %p69
      %p72 = scmp.ne.s32.totalorder %s57, %s71
      %p73 = scmp.eq.s32.totalorder %s26, 0
      %p74 = por %p72, %p73
      %s76 = sadd.s32 %s75, 1
      %p79 = scmp.eq.s32.totalorder %s20, 1
      %p80 = scmp.ne.s32.totalorder %s75, %s77
      %p81 = scmp.eq.s32.totalorder %s20, 0
      %p82 = por %p80, %p81
      %p83 = scmp.ne.s32.totalorder %s75, %s77
      %p84 = scmp.eq.s32.totalorder %s25, 1
      %p85 = por %p83, %p84
      %p86 = scmp.ne.s32.totalorder %s77, %s78
      %p87 = scmp.eq.s32.totalorder %s25, 0
      %p88 = por %p86, %p87
      %p89 = scmp.ne.s32.totalorder %s77, %s78
      %p90 = scmp.eq.s32.totalorder %s26, 1
      %p91 = por %p89, %p90
      %p93 = scmp.ne.s32.totalorder %s78, %s92
      %p94 = scmp.eq.s32.totalorder %s26, 0
      %p95 = por %p93, %p94
      %s97 = sadd.s32 %s96, 1
      %p100 = scmp.eq.s32.totalorder %s20, 1
      %p101 = scmp.ne.s32.totalorder %s96, %s98
      %p102 = scmp.eq.s32.totalorder %s20, 0
      %p103 = por %p101, %p102
      %p104 = scmp.ne.s32.totalorder %s96, %s98
      %p105 = scmp.eq.s32.totalorder %s25, 1
      %p106 = por %p104, %p105
      %p107 = scmp.ne.s32.totalorder %s98, %s99
      %p108 = scmp.eq.s32.totalorder %s25, 0
      %p109 = por %p107, %p108
      %p110 = scmp.ne.s32.totalorder %s98, %s99
      %p111 = scmp.eq.s32.totalorder %s26, 1
      %p112 = por %p110, %p111
      %p114 = scmp.ne.s32.totalorder %s99, %s113
      %p115 = scmp.eq.s32.totalorder %s26, 0
      %p116 = por %p114, %p115
      %s118 = sadd.s32 %s117, 1
      %p121 = scmp.eq.s32.totalorder %s20, 1
      %p122 = scmp.ne.s32.totalorder %s117, %s119
      %p123 = scmp.eq.s32.totalorder %s20, 0
      %p124 = por %p122, %p123
      %p125 = scmp.ne.s32.totalorder %s117, %s119
      %p126 = scmp.eq.s32.totalorder %s25, 1
      %p127 = por %p125, %p126
      %p128 = scmp.ne.s32.totalorder %s119, %s120
      %p129 = scmp.eq.s32.totalorder %s25, 0
      %p130 = por %p128, %p129
      %p131 = scmp.ne.s32.totalorder %s119, %s120
      %p132 = scmp.eq.s32.totalorder %s26, 1
      %p133 = por %p131, %p132
      %p135 = scmp.ne.s32.totalorder %s120, %s134
      %p136 = scmp.eq.s32.totalorder %s26, 0
      %p137 = por %p135, %p136
      %s139 = sadd.s32 %s138, 1
      %p142 = scmp.eq.s32.totalorder %s20, 1
      %p143 = scmp.ne.s32.totalorder %s138, %s140
      %p144 = scmp.eq.s32.totalorder %s20, 0
      %p145 = por %p143, %p144
      %p146 = scmp.ne.s32.totalorder %s138, %s140
      %p147 = scmp.eq.s32.totalorder %s25, 1
      %p148 = por %p146, %p147
      %p149 = scmp.ne.s32.totalorder %s140, %s141
      %p150 = scmp.eq.s32.totalorder %s25, 0
      %p151 = por %p149, %p150
      %p152 = scmp.ne.s32.totalorder %s140, %s141
      %p153 = scmp.eq.s32.totalorder %s26, 1
      %p154 = por %p152, %p153
      %p156 = scmp.ne.s32.totalorder %s141, %s155
      %p157 = scmp.eq.s32.totalorder %s26, 0
      %p158 = por %p156, %p157
      %s160 = sadd.s32 %s159, 1
      %p163 = scmp.eq.s32.totalorder %s20, 1
      %p164 = scmp.ne.s32.totalorder %s159, %s161
      %p165 = scmp.eq.s32.totalorder %s20, 0
      %p166 = por %p164, %p165
      %p167 = scmp.ne.s32.totalorder %s159, %s161
      %p168 = scmp.eq.s32.totalorder %s25, 1
      %p169 = por %p167, %p168
      %p170 = scmp.ne.s32.totalorder %s161, %s162
      %p171 = scmp.eq.s32.totalorder %s25, 0
      %p172 = por %p170, %p171
      %p173 = scmp.ne.s32.totalorder %s161, %s162
      %p174 = scmp.eq.s32.totalorder %s26, 1
      %p175 = por %p173, %p174
      %p177 = scmp.ne.s32.totalorder %s162, %s176
      %p178 = scmp.eq.s32.totalorder %s26, 0
      %p179 = por %p177, %p178
      %s181 = sadd.s32 %s180, 1
      %p184 = scmp.eq.s32.totalorder %s20, 1
      %p185 = scmp.ne.s32.totalorder %s180, %s182
      %p186 = scmp.eq.s32.totalorder %s20, 0
      %p187 = por %p185, %p186
      %p188 = scmp.ne.s32.totalorder %s180, %s182
      %p189 = scmp.eq.s32.totalorder %s25, 1
      %p190 = por %p188, %p189
      %p191 = scmp.ne.s32.totalorder %s182, %s183
      %p192 = scmp.eq.s32.totalorder %s25, 0
      %p193 = por %p191, %p192
      %p194 = scmp.ne.s32.totalorder %s182, %s183
      %p195 = scmp.eq.s32.totalorder %s26, 1
      %p196 = por %p194, %p195
      %p198 = scmp.ne.s32.totalorder %s183, %s197
      %p199 = scmp.eq.s32.totalorder %s26, 0
      %p200 = por %p198, %p199
      %s202 = sadd.s32 %s201, 1
      %p205 = scmp.eq.s32.totalorder %s20, 1
      %p206 = scmp.ne.s32.totalorder %s201, %s203
      %p207 = scmp.eq.s32.totalorder %s20, 0
      %p208 = por %p206, %p207
      %p209 = scmp.ne.s32.totalorder %s201, %s203
      %p210 = scmp.eq.s32.totalorder %s25, 1
      %p211 = por %p209, %p210
      %p212 = scmp.ne.s32.totalorder %s203, %s204
      %p213 = scmp.eq.s32.totalorder %s25, 0
      %p214 = por %p212, %p213
      %p215 = scmp.ne.s32.totalorder %s203, %s204
      %p216 = scmp.eq.s32.totalorder %s26, 1
      %p217 = por %p215, %p216
      %p219 = scmp.ne.s32.totalorder %s204, %s218
      %p220 = scmp.eq.s32.totalorder %s26, 0
      %p221 = por %p219, %p220
      %s222 = ssub.s32 %s20, %s27
      %p223 = scmp.eq.s32.totalorder %s222, 0
      %s225 = sadd.s32 %s224, 1
      %s226 = scalar_select %p223, %s224, %s225
      %p229 = pneg %p223
      %p230 = scmp.eq.s32.totalorder %s20, 1
      %p231 = por %p229, %p230
      %p232 = scmp.ne.s32.totalorder %s224, %s227
      %p233 = scmp.eq.s32.totalorder %s20, 0
      %p234 = por %p232, %p233
      %p235 = scmp.ne.s32.totalorder %s224, %s227
      %p236 = scmp.eq.s32.totalorder %s25, 1
      %p237 = por %p235, %p236
      %p238 = scmp.ne.s32.totalorder %s227, %s228
      %p239 = scmp.eq.s32.totalorder %s25, 0
      %p240 = por %p238, %p239
      %p241 = scmp.ne.s32.totalorder %s227, %s228
      %p242 = scmp.eq.s32.totalorder %s26, 1
      %p243 = por %p241, %p242
      %p245 = scmp.ne.s32.totalorder %s228, %s244
      %p246 = scmp.eq.s32.totalorder %s26, 0
      %p247 = por %p245, %p246
      %p248 = scmp.le.s32.totalorder 1, %s20
      %p249 = scmp.lt.s32.totalorder %s20, 3
      %p250 = pnand %p248, %p249
      %p251 = pneg %p250
      // Predicated region
      $region9: #{fcnn_forward.1} parent=5 // pred_check
        _
      $region10: #{fcnn_forward.1} parent=5 // pred_check_branch
        %253 = sbr.rel (%p250) target = $region12
      $region11: #{fcnn_forward.1} parent=5 // pred_region
        %s254 = ssub.s32 %s20, 1
        // Predicated region
        $region13: #{fcnn_forward.1} parent=11 // pred_check
          %p255 = pneg %p67
        $region14: #{fcnn_forward.1} parent=11 // pred_check_branch
          %257 = sbr.rel (%p255) target = $region16
        $region15: #{fcnn_forward.1} parent=11 // pred_region
          _
        $region16: #{fcnn_forward.1} parent=11 // pred_fallthru
          _
        // Predicated region
        $region17: #{fcnn_forward.1} parent=11 // pred_check
          %p258 = pneg %p88
        $region18: #{fcnn_forward.1} parent=11 // pred_check_branch
          %260 = sbr.rel (%p258) target = $region20
        $region19: #{fcnn_forward.1} parent=11 // pred_region
          _
        $region20: #{fcnn_forward.1} parent=11 // pred_fallthru
          _
        // Predicated region
        $region21: #{fcnn_forward.1} parent=11 // pred_check
          %p261 = pneg %p109
        $region22: #{fcnn_forward.1} parent=11 // pred_check_branch
          %263 = sbr.rel (%p261) target = $region24
        $region23: #{fcnn_forward.1} parent=11 // pred_region
          _
        $region24: #{fcnn_forward.1} parent=11 // pred_fallthru
          _
        // Predicated region
        $region25: #{fcnn_forward.1} parent=11 // pred_check
          %p264 = pneg %p130
        $region26: #{fcnn_forward.1} parent=11 // pred_check_branch
          %266 = sbr.rel (%p264) target = $region28
        $region27: #{fcnn_forward.1} parent=11 // pred_region
          _
        $region28: #{fcnn_forward.1} parent=11 // pred_fallthru
          _
        // Predicated region
        $region29: #{fcnn_forward.1} parent=11 // pred_check
          %p267 = pneg %p151
        $region30: #{fcnn_forward.1} parent=11 // pred_check_branch
          %269 = sbr.rel (%p267) target = $region32
        $region31: #{fcnn_forward.1} parent=11 // pred_region
          _
        $region32: #{fcnn_forward.1} parent=11 // pred_fallthru
          _
        // Predicated region
        $region33: #{fcnn_forward.1} parent=11 // pred_check
          %p270 = pneg %p172
        $region34: #{fcnn_forward.1} parent=11 // pred_check_branch
          %272 = sbr.rel (%p270) target = $region36
        $region35: #{fcnn_forward.1} parent=11 // pred_region
          _
        $region36: #{fcnn_forward.1} parent=11 // pred_fallthru
          _
        // Predicated region
        $region37: #{fcnn_forward.1} parent=11 // pred_check
          %p273 = pneg %p193
        $region38: #{fcnn_forward.1} parent=11 // pred_check_branch
          %275 = sbr.rel (%p273) target = $region40
        $region39: #{fcnn_forward.1} parent=11 // pred_region
          _
        $region40: #{fcnn_forward.1} parent=11 // pred_fallthru
          _
        // Predicated region
        $region41: #{fcnn_forward.1} parent=11 // pred_check
          %p276 = pneg %p214
        $region42: #{fcnn_forward.1} parent=11 // pred_check_branch
          %278 = sbr.rel (%p276) target = $region44
        $region43: #{fcnn_forward.1} parent=11 // pred_region
          _
        $region44: #{fcnn_forward.1} parent=11 // pred_fallthru
          _
      $region12: #{fcnn_forward.1} parent=5 // pred_fallthru
        _
      %p279 = scmp.lt.s32.totalorder %s20, 2
      // Predicated region
      $region45: #{fcnn_forward.1} parent=5 // pred_check
        %p280 = pneg %p279
      $region46: #{fcnn_forward.1} parent=5 // pred_check_branch
        %282 = sbr.rel (%p280) target = $region48
      $region47: #{fcnn_forward.1} parent=5 // pred_region
        // Predicated region
        $region49: #{fcnn_forward.1} parent=47 // pred_check
          %p283 = pneg %p40
        $region50: #{fcnn_forward.1} parent=47 // pred_check_branch
          %285 = sbr.rel (%p283) target = $region52
        $region51: #{fcnn_forward.1} parent=47 // pred_region
          %s286 = smul.u32 32, %s20
          %p287 = scmp.lt.s32.totalorder %s286, 63
          %s288 = scalar_select %p287, %s286, 63
          %s289 = smul.addr %s288, 8
          %s290 = scalar_lea.vmem %s0, %s289
          %s291 = smul.u32 32, %s20
        $region52: #{fcnn_forward.1} parent=47 // pred_fallthru
          _
      $region48: #{fcnn_forward.1} parent=5 // pred_fallthru
        _
      %p292 = scmp.le.s32.totalorder 1, %s20
      %p293 = scmp.lt.s32.totalorder %s20, 3
      %p294 = pnand %p292, %p293
      %p295 = pneg %p294
      // Predicated region
      $region53: #{fcnn_forward.1} parent=5 // pred_check
        _
      $region54: #{fcnn_forward.1} parent=5 // pred_check_branch
        %297 = sbr.rel (%p294) target = $region56
      $region55: #{fcnn_forward.1} parent=5 // pred_region
        %s298 = ssub.s32 %s20, 1
        %s299 = smul.u32 32, %s25
        %p300 = scmp.lt.s32.totalorder %s299, 63
        %s301 = scalar_select %p300, %s299, 63
        %s302 = smul.addr %s301, 8
        %s303 = scalar_lea.vmem %s0, %s302
        %p304 = pneg %p46
        %p305 = pneg %p43
        %p306 = pneg %p67
        %p307 = pneg %p64
        %p308 = pneg %p88
        %p309 = pneg %p85
        %p310 = pneg %p109
        %p311 = pneg %p106
        %p312 = pneg %p130
        %p313 = pneg %p127
        %p314 = pneg %p151
        %p315 = pneg %p148
        %p316 = pneg %p172
        %p317 = pneg %p169
        %p318 = pneg %p193
        %p319 = pneg %p190
        %p320 = pneg %p214
        %p321 = pneg %p211
        %p322 = pneg %p240
        %p323 = pneg %p237
        %s324 = sand.u32 %s227, 1
        %s325 = scalar_lea.sflag [#allocation4], %s324
        %s326 = sand.u32 %s227, 1
        %s327 = smul.addr %s326, 2
        %s328 = scalar_lea.vmem [#allocation3], %s327
        %s329 = smul.u32 32, %s25
        %p330 = scmp.lt.s32.totalorder %s329, 63
        %s331 = scalar_select %p330, %s329, 63
        %s332 = smul.addr %s331, 8
        %s333 = scalar_lea.vmem %s0, %s332
        %s334 = smul.u32 32, %s25
        %s335 = smul.u32 2, %s25
        %v336 = vld [vmem:[%s333] sm:$0xff]
        %v337 = vld [vmem:[%s333 + $0x8] sm:$0xff]
        %v338 = vld [vmem:[%s333 + $0x10] sm:$0xff]
        %v339 = vld [vmem:[%s333 + $0x18] sm:$0xff]
        %v340 = vld [vmem:[%s333 + $0x20] sm:$0xff]
        %v341 = vld [vmem:[%s333 + $0x28] sm:$0xff]
        %v342 = vld [vmem:[%s333 + $0x30] sm:$0xff]
        %v343 = vld [vmem:[%s333 + $0x38] sm:$0xff]
        %v344 = vld [vmem:[%s333 + $0x40] sm:$0xff]
        %v345 = vld [vmem:[%s333 + $0x48] sm:$0xff]
        %v346 = vld [vmem:[%s333 + $0x50] sm:$0xff]
        %v347 = vld [vmem:[%s333 + $0x58] sm:$0xff]
        %v348 = vld [vmem:[%s333 + $0x60] sm:$0xff]
        %v349 = vld [vmem:[%s333 + $0x68] sm:$0xff]
        %v350 = vld [vmem:[%s333 + $0x70] sm:$0xff]
        %v351 = vld [vmem:[%s333 + $0x78] sm:$0xff]
        %v352 = vld [vmem:[%s333 + $0x80] sm:$0xff]
        %v353 = vld [vmem:[%s333 + $0x88] sm:$0xff]
        %v354 = vld [vmem:[%s333 + $0x90] sm:$0xff]
        %v355 = vld [vmem:[%s333 + $0x98] sm:$0xff]
        %v356 = vld [vmem:[%s333 + $0xa0] sm:$0xff]
        %v357 = vld [vmem:[%s333 + $0xa8] sm:$0xff]
        %v358 = vld [vmem:[%s333 + $0xb0] sm:$0xff]
        %v359 = vld [vmem:[%s333 + $0xb8] sm:$0xff]
        %v360 = vld [vmem:[%s333 + $0xc0] sm:$0xff]
        %v361 = vld [vmem:[%s333 + $0xc8] sm:$0xff]
        %v362 = vld [vmem:[%s333 + $0xd0] sm:$0xff]
        %v363 = vld [vmem:[%s333 + $0xd8] sm:$0xff]
        %v364 = vld [vmem:[%s333 + $0xe0] sm:$0xff]
        %v365 = vld [vmem:[%s333 + $0xe8] sm:$0xff]
        %v366 = vld [vmem:[%s333 + $0xf0] sm:$0xff]
        %v367 = vld [vmem:[%s333 + $0xf8] sm:$0xff]
        %v368 = vld [vmem:[%s1] sm:$0xff]
        %v369 = vld [vmem:[%s1 + $0x8] sm:$0xff]
        %v370 = vld [vmem:[%s1 + $0x10] sm:$0xff]
        %v371 = vld [vmem:[%s1 + $0x18] sm:$0xff]
        %v372 = vld [vmem:[%s1 + $0x20] sm:$0xff]
        %v373 = vld [vmem:[%s1 + $0x28] sm:$0xff]
        %v374 = vld [vmem:[%s1 + $0x30] sm:$0xff]
        %v375 = vld [vmem:[%s1 + $0x38] sm:$0xff]
        %v376 = vld [vmem:[%s1 + $0x40] sm:$0xff]
        %v377 = vld [vmem:[%s1 + $0x48] sm:$0xff]
        %v378 = vld [vmem:[%s1 + $0x50] sm:$0xff]
        %v379 = vld [vmem:[%s1 + $0x58] sm:$0xff]
        %v380 = vld [vmem:[%s1 + $0x60] sm:$0xff]
        %v381 = vld [vmem:[%s1 + $0x68] sm:$0xff]
        %v382 = vld [vmem:[%s1 + $0x70] sm:$0xff]
        %v383 = vld [vmem:[%s1 + $0x78] sm:$0xff]
        %v384 = vld [vmem:[%s1 + $0x80] sm:$0xff]
        %v385 = vld [vmem:[%s1 + $0x88] sm:$0xff]
        %v386 = vld [vmem:[%s1 + $0x90] sm:$0xff]
        %v387 = vld [vmem:[%s1 + $0x98] sm:$0xff]
        %v388 = vld [vmem:[%s1 + $0xa0] sm:$0xff]
        %v389 = vld [vmem:[%s1 + $0xa8] sm:$0xff]
        %v390 = vld [vmem:[%s1 + $0xb0] sm:$0xff]
        %v391 = vld [vmem:[%s1 + $0xb8] sm:$0xff]
        %v392 = vld [vmem:[%s1 + $0xc0] sm:$0xff]
        %v393 = vld [vmem:[%s1 + $0xc8] sm:$0xff]
        %v394 = vld [vmem:[%s1 + $0xd0] sm:$0xff]
        %v395 = vld [vmem:[%s1 + $0xd8] sm:$0xff]
        %v396 = vld [vmem:[%s1 + $0xe0] sm:$0xff]
        %v397 = vld [vmem:[%s1 + $0xe8] sm:$0xff]
        %v398 = vld [vmem:[%s1 + $0xf0] sm:$0xff]
        %v399 = vld [vmem:[%s1 + $0xf8] sm:$0xff]
        %v400 = vld [vmem:[%s2] sm:$0x3]
        %v402 = vlaneseq
        %v403 = vshrl.u32 %v402, 7
        %v404 = vsub.s32 0, %v403
        %v405 = vrot.slane %v400, %v404
        %v406 = vlaneseq
        %v407 = vshrl.u32 %v406, 7
        %v408 = vsub.s32 1, %v407
        %v409 = vrot.slane %v400, %v408
        %412 = vmatprep.subr.mxu0 %v369
        %413 = vmatpush1.msra.mxu0 %v368
        %414 = vmatprep.subr.mxu0 %v371
        %415 = vmatpush1.msra.mxu0 %v370
        %416 = vmatprep.subr.mxu0 %v373
        %417 = vmatpush1.msra.mxu0 %v372
        %418 = vmatprep.subr.mxu0 %v375
        %419 = vmatpush1.msra.mxu0 %v374
        %420 = vmatprep.subr.mxu0 %v377
        %421 = vmatpush1.msra.mxu0 %v376
        %422 = vmatprep.subr.mxu0 %v379
        %423 = vmatpush1.msra.mxu0 %v378
        %424 = vmatprep.subr.mxu0 %v381
        %425 = vmatpush1.msra.mxu0 %v380
        %426 = vmatprep.subr.mxu0 %v383
        %427 = vmatpush1.msra.mxu0 %v382
        %428 = vmatprep.subr.mxu0 %v385
        %429 = vmatpush1.msra.mxu0 %v384
        %430 = vmatprep.subr.mxu0 %v387
        %431 = vmatpush1.msra.mxu0 %v386
        %432 = vmatprep.subr.mxu0 %v389
        %433 = vmatpush1.msra.mxu0 %v388
        %434 = vmatprep.subr.mxu0 %v391
        %435 = vmatpush1.msra.mxu0 %v390
        %436 = vmatprep.subr.mxu0 %v393
        %437 = vmatpush1.msra.mxu0 %v392
        %438 = vmatprep.subr.mxu0 %v395
        %439 = vmatpush1.msra.mxu0 %v394
        %440 = vmatprep.subr.mxu0 %v397
        %441 = vmatpush1.msra.mxu0 %v396
        %442 = vmatprep.subr.mxu0 %v399
        %443 = vmatpush1.msra.mxu0 %v398
        %444 = vmatprep.subr.mxu0 0.0
        %445 = vmatpush1.msra.mxu0 0.0
        %446 = vmatprep.subr.mxu0 0.0
        %447 = vmatpush1.msra.mxu0 0.0
        %448 = vmatprep.subr.mxu0 0.0
        %449 = vmatpush1.msra.mxu0 0.0
        %450 = vmatprep.subr.mxu0 0.0
        %451 = vmatpush1.msra.mxu0 0.0
        %452 = vmatprep.subr.mxu0 0.0
        %453 = vmatpush1.msra.mxu0 0.0
        %454 = vmatprep.subr.mxu0 0.0
        %455 = vmatpush1.msra.mxu0 0.0
        %456 = vmatprep.subr.mxu0 0.0
        %457 = vmatpush1.msra.mxu0 0.0
        %458 = vmatprep.subr.mxu0 0.0
        %459 = vmatpush1.msra.mxu0 0.0
        %460 = vmatprep.subr.mxu0 0.0
        %461 = vmatpush1.msra.mxu0 0.0
        %462 = vmatprep.subr.mxu0 0.0
        %463 = vmatpush1.msra.mxu0 0.0
        %464 = vmatprep.subr.mxu0 0.0
        %465 = vmatpush1.msra.mxu0 0.0
        %466 = vmatprep.subr.mxu0 0.0
        %467 = vmatpush1.msra.mxu0 0.0
        %468 = vmatprep.subr.mxu0 0.0
        %469 = vmatpush1.msra.mxu0 0.0
        %470 = vmatprep.subr.mxu0 0.0
        %471 = vmatpush1.msra.mxu0 0.0
        %472 = vmatprep.subr.mxu0 0.0
        %473 = vmatpush1.msra.mxu0 0.0
        %474 = vmatprep.subr.mxu0 0.0
        %475 = vmatpush1.msra.mxu0 0.0
        %476 = vmatprep.mubr.f32.mxu0 0.0
        %477 = vmatmul.mubr.f32.gmra.mrb[0].mxu0 %v336
        %v478 = vpop.f32.mrb[0].mxu0
        %v479 = vadd.f32 %v405, %v478
        %v480 = vpop.f32.mrb[0].mxu0
        %v481 = vadd.f32 %v409, %v480
        %482 = vmatprep.mubr.f32.mxu0 0.0
        %483 = vmatmul.mubr.f32.gmra.mrb[0].mxu0 %v337
        %v484 = vpop.f32.mrb[0].mxu0
        %v485 = vadd.f32 %v405, %v484
        %v486 = vpop.f32.mrb[0].mxu0
        %v487 = vadd.f32 %v409, %v486
        %488 = vmatprep.mubr.f32.mxu0 0.0
        %489 = vmatmul.mubr.f32.gmra.mrb[0].mxu0 %v338
        %v490 = vpop.f32.mrb[0].mxu0
        %v491 = vadd.f32 %v405, %v490
        %v492 = vpop.f32.mrb[0].mxu0
        %v493 = vadd.f32 %v409, %v492
        %494 = vmatprep.mubr.f32.mxu0 0.0
        %495 = vmatmul.mubr.f32.gmra.mrb[0].mxu0 %v339
        %v496 = vpop.f32.mrb[0].mxu0
        %v497 = vadd.f32 %v405, %v496
        %v498 = vpop.f32.mrb[0].mxu0
        %v499 = vadd.f32 %v409, %v498
        %500 = vmatprep.mubr.f32.mxu0 0.0
        %501 = vmatmul.mubr.f32.gmra.mrb[0].mxu0 %v340
        %v502 = vpop.f32.mrb[0].mxu0
        %v503 = vadd.f32 %v405, %v502
        %v504 = vpop.f32.mrb[0].mxu0
        %v505 = vadd.f32 %v409, %v504
        %506 = vmatprep.mubr.f32.mxu0 0.0
        %507 = vmatmul.mubr.f32.gmra.mrb[0].mxu0 %v341
        %v508 = vpop.f32.mrb[0].mxu0
        %v509 = vadd.f32 %v405, %v508
        %v510 = vpop.f32.mrb[0].mxu0
        %v511 = vadd.f32 %v409, %v510
        %512 = vmatprep.mubr.f32.mxu0 0.0
        %513 = vmatmul.mubr.f32.gmra.mrb[0].mxu0 %v342
        %v514 = vpop.f32.mrb[0].mxu0
        %v515 = vadd.f32 %v405, %v514
        %v516 = vpop.f32.mrb[0].mxu0
        %v517 = vadd.f32 %v409, %v516
        %518 = vmatprep.mubr.f32.mxu0 0.0
        %519 = vmatmul.mubr.f32.gmra.mrb[0].mxu0 %v343
        %v520 = vpop.f32.mrb[0].mxu0
        %v521 = vadd.f32 %v405, %v520
        %v522 = vpop.f32.mrb[0].mxu0
        %v523 = vadd.f32 %v409, %v522
        %524 = vmatprep.mubr.f32.mxu0 0.0
        %525 = vmatmul.mubr.f32.gmra.mrb[0].mxu0 %v344
        %v526 = vpop.f32.mrb[0].mxu0
        %v527 = vadd.f32 %v405, %v526
        %v528 = vpop.f32.mrb[0].mxu0
        %v529 = vadd.f32 %v409, %v528
        %530 = vmatprep.mubr.f32.mxu0 0.0
        %531 = vmatmul.mubr.f32.gmra.mrb[0].mxu0 %v345
        %v532 = vpop.f32.mrb[0].mxu0
        %v533 = vadd.f32 %v405, %v532
        %v534 = vpop.f32.mrb[0].mxu0
        %v535 = vadd.f32 %v409, %v534
        %536 = vmatprep.mubr.f32.mxu0 0.0
        %537 = vmatmul.mubr.f32.gmra.mrb[0].mxu0 %v346
        %v538 = vpop.f32.mrb[0].mxu0
        %v539 = vadd.f32 %v405, %v538
        %v540 = vpop.f32.mrb[0].mxu0
        %v541 = vadd.f32 %v409, %v540
        %542 = vmatprep.mubr.f32.mxu0 0.0
        %543 = vmatmul.mubr.f32.gmra.mrb[0].mxu0 %v347
        %v544 = vpop.f32.mrb[0].mxu0
        %v545 = vadd.f32 %v405, %v544
        %v546 = vpop.f32.mrb[0].mxu0
        %v547 = vadd.f32 %v409, %v546
        %548 = vmatprep.mubr.f32.mxu0 0.0
        %549 = vmatmul.mubr.f32.gmra.mrb[0].mxu0 %v348
        %v550 = vpop.f32.mrb[0].mxu0
        %v551 = vadd.f32 %v405, %v550
        %v552 = vpop.f32.mrb[0].mxu0
        %v553 = vadd.f32 %v409, %v552
        %554 = vmatprep.mubr.f32.mxu0 0.0
        %555 = vmatmul.mubr.f32.gmra.mrb[0].mxu0 %v349
        %v556 = vpop.f32.mrb[0].mxu0
        %v557 = vadd.f32 %v405, %v556
        %v558 = vpop.f32.mrb[0].mxu0
        %v559 = vadd.f32 %v409, %v558
        %560 = vmatprep.mubr.f32.mxu0 0.0
        %561 = vmatmul.mubr.f32.gmra.mrb[0].mxu0 %v350
        %v562 = vpop.f32.mrb[0].mxu0
        %v563 = vadd.f32 %v405, %v562
        %v564 = vpop.f32.mrb[0].mxu0
        %v565 = vadd.f32 %v409, %v564
        %566 = vmatprep.mubr.f32.mxu0 0.0
        %567 = vmatmul.mubr.f32.gmra.mrb[0].mxu0 %v351
        %v568 = vpop.f32.mrb[0].mxu0
        %v569 = vadd.f32 %v405, %v568
        %v570 = vpop.f32.mrb[0].mxu0
        %v571 = vadd.f32 %v409, %v570
        %572 = vmatprep.mubr.f32.mxu0 0.0
        %573 = vmatmul.mubr.f32.gmra.mrb[0].mxu0 %v352
        %v574 = vpop.f32.mrb[0].mxu0
        %v575 = vadd.f32 %v405, %v574
        %v576 = vpop.f32.mrb[0].mxu0
        %v577 = vadd.f32 %v409, %v576
        %578 = vmatprep.mubr.f32.mxu0 0.0
        %579 = vmatmul.mubr.f32.gmra.mrb[0].mxu0 %v353
        %v580 = vpop.f32.mrb[0].mxu0
        %v581 = vadd.f32 %v405, %v580
        %v582 = vpop.f32.mrb[0].mxu0
        %v583 = vadd.f32 %v409, %v582
        %584 = vmatprep.mubr.f32.mxu0 0.0
        %585 = vmatmul.mubr.f32.gmra.mrb[0].mxu0 %v354
        %v586 = vpop.f32.mrb[0].mxu0
        %v587 = vadd.f32 %v405, %v586
        %v588 = vpop.f32.mrb[0].mxu0
        %v589 = vadd.f32 %v409, %v588
        %590 = vmatprep.mubr.f32.mxu0 0.0
        %591 = vmatmul.mubr.f32.gmra.mrb[0].mxu0 %v355
        %v592 = vpop.f32.mrb[0].mxu0
        %v593 = vadd.f32 %v405, %v592
        %v594 = vpop.f32.mrb[0].mxu0
        %v595 = vadd.f32 %v409, %v594
        %596 = vmatprep.mubr.f32.mxu0 0.0
        %597 = vmatmul.mubr.f32.gmra.mrb[0].mxu0 %v356
        %v598 = vpop.f32.mrb[0].mxu0
        %v599 = vadd.f32 %v405, %v598
        %v600 = vpop.f32.mrb[0].mxu0
        %v601 = vadd.f32 %v409, %v600
        %602 = vmatprep.mubr.f32.mxu0 0.0
        %603 = vmatmul.mubr.f32.gmra.mrb[0].mxu0 %v357
        %v604 = vpop.f32.mrb[0].mxu0
        %v605 = vadd.f32 %v405, %v604
        %v606 = vpop.f32.mrb[0].mxu0
        %v607 = vadd.f32 %v409, %v606
        %608 = vmatprep.mubr.f32.mxu0 0.0
        %609 = vmatmul.mubr.f32.gmra.mrb[0].mxu0 %v358
        %v610 = vpop.f32.mrb[0].mxu0
        %v611 = vadd.f32 %v405, %v610
        %v612 = vpop.f32.mrb[0].mxu0
        %v613 = vadd.f32 %v409, %v612
        %614 = vmatprep.mubr.f32.mxu0 0.0
        %615 = vmatmul.mubr.f32.gmra.mrb[0].mxu0 %v359
        %v616 = vpop.f32.mrb[0].mxu0
        %v617 = vadd.f32 %v405, %v616
        %v618 = vpop.f32.mrb[0].mxu0
        %v619 = vadd.f32 %v409, %v618
        %620 = vmatprep.mubr.f32.mxu0 0.0
        %621 = vmatmul.mubr.f32.gmra.mrb[0].mxu0 %v360
        %v622 = vpop.f32.mrb[0].mxu0
        %v623 = vadd.f32 %v405, %v622
        %v624 = vpop.f32.mrb[0].mxu0
        %v625 = vadd.f32 %v409, %v624
        %626 = vmatprep.mubr.f32.mxu0 0.0
        %627 = vmatmul.mubr.f32.gmra.mrb[0].mxu0 %v361
        %v628 = vpop.f32.mrb[0].mxu0
        %v629 = vadd.f32 %v405, %v628
        %v630 = vpop.f32.mrb[0].mxu0
        %v631 = vadd.f32 %v409, %v630
        %632 = vmatprep.mubr.f32.mxu0 0.0
        %633 = vmatmul.mubr.f32.gmra.mrb[0].mxu0 %v362
        %v634 = vpop.f32.mrb[0].mxu0
        %v635 = vadd.f32 %v405, %v634
        %v636 = vpop.f32.mrb[0].mxu0
        %v637 = vadd.f32 %v409, %v636
        %638 = vmatprep.mubr.f32.mxu0 0.0
        %639 = vmatmul.mubr.f32.gmra.mrb[0].mxu0 %v363
        %v640 = vpop.f32.mrb[0].mxu0
        %v641 = vadd.f32 %v405, %v640
        %v642 = vpop.f32.mrb[0].mxu0
        %v643 = vadd.f32 %v409, %v642
        %644 = vmatprep.mubr.f32.mxu0 0.0
        %645 = vmatmul.mubr.f32.gmra.mrb[0].mxu0 %v364
        %v646 = vpop.f32.mrb[0].mxu0
        %v647 = vadd.f32 %v405, %v646
        %v648 = vpop.f32.mrb[0].mxu0
        %v649 = vadd.f32 %v409, %v648
        %650 = vmatprep.mubr.f32.mxu0 0.0
        %651 = vmatmul.mubr.f32.gmra.mrb[0].mxu0 %v365
        %v652 = vpop.f32.mrb[0].mxu0
        %v653 = vadd.f32 %v405, %v652
        %v654 = vpop.f32.mrb[0].mxu0
        %v655 = vadd.f32 %v409, %v654
        %656 = vmatprep.mubr.f32.mxu0 0.0
        %657 = vmatmul.mubr.f32.gmra.mrb[0].mxu0 %v366
        %v658 = vpop.f32.mrb[0].mxu0
        %v659 = vadd.f32 %v405, %v658
        %v660 = vpop.f32.mrb[0].mxu0
        %v661 = vadd.f32 %v409, %v660
        %662 = vmatprep.mubr.f32.mxu0 0.0
        %663 = vmatmul.mubr.f32.gmra.mrb[0].mxu0 %v367
        %v664 = vpop.f32.mrb[0].mxu0
        %v665 = vadd.f32 %v405, %v664
        %v666 = vpop.f32.mrb[0].mxu0
        %v667 = vadd.f32 %v409, %v666
        %668 = vdwg.mxu0
        %v669 = vmax.f32 %v479, 0.0
        %v670 = vmax.f32 %v481, 0.0
        %v671 = vmax.f32 %v485, 0.0
        %v672 = vmax.f32 %v487, 0.0
        %v673 = vmax.f32 %v491, 0.0
        %v674 = vmax.f32 %v493, 0.0
        %v675 = vmax.f32 %v497, 0.0
        %v676 = vmax.f32 %v499, 0.0
        %v677 = vmax.f32 %v503, 0.0
        %v678 = vmax.f32 %v505, 0.0
        %v679 = vmax.f32 %v509, 0.0
        %v680 = vmax.f32 %v511, 0.0
        %v681 = vmax.f32 %v515, 0.0
        %v682 = vmax.f32 %v517, 0.0
        %v683 = vmax.f32 %v521, 0.0
        %v684 = vmax.f32 %v523, 0.0
        %v685 = vmax.f32 %v527, 0.0
        %v686 = vmax.f32 %v529, 0.0
        %v687 = vmax.f32 %v533, 0.0
        %v688 = vmax.f32 %v535, 0.0
        %v689 = vmax.f32 %v539, 0.0
        %v690 = vmax.f32 %v541, 0.0
        %v691 = vmax.f32 %v545, 0.0
        %v692 = vmax.f32 %v547, 0.0
        %v693 = vmax.f32 %v551, 0.0
        %v694 = vmax.f32 %v553, 0.0
        %v695 = vmax.f32 %v557, 0.0
        %v696 = vmax.f32 %v559, 0.0
        %v697 = vmax.f32 %v563, 0.0
        %v698 = vmax.f32 %v565, 0.0
        %v699 = vmax.f32 %v569, 0.0
        %v700 = vmax.f32 %v571, 0.0
        %v701 = vmax.f32 %v575, 0.0
        %v702 = vmax.f32 %v577, 0.0
        %v703 = vmax.f32 %v581, 0.0
        %v704 = vmax.f32 %v583, 0.0
        %v705 = vmax.f32 %v587, 0.0
        %v706 = vmax.f32 %v589, 0.0
        %v707 = vmax.f32 %v593, 0.0
        %v708 = vmax.f32 %v595, 0.0
        %v709 = vmax.f32 %v599, 0.0
        %v710 = vmax.f32 %v601, 0.0
        %v711 = vmax.f32 %v605, 0.0
        %v712 = vmax.f32 %v607, 0.0
        %v713 = vmax.f32 %v611, 0.0
        %v714 = vmax.f32 %v613, 0.0
        %v715 = vmax.f32 %v617, 0.0
        %v716 = vmax.f32 %v619, 0.0
        %v717 = vmax.f32 %v623, 0.0
        %v718 = vmax.f32 %v625, 0.0
        %v719 = vmax.f32 %v629, 0.0
        %v720 = vmax.f32 %v631, 0.0
        %v721 = vmax.f32 %v635, 0.0
        %v722 = vmax.f32 %v637, 0.0
        %v723 = vmax.f32 %v641, 0.0
        %v724 = vmax.f32 %v643, 0.0
        %v725 = vmax.f32 %v647, 0.0
        %v726 = vmax.f32 %v649, 0.0
        %v727 = vmax.f32 %v653, 0.0
        %v728 = vmax.f32 %v655, 0.0
        %v729 = vmax.f32 %v659, 0.0
        %v730 = vmax.f32 %v661, 0.0
        %v731 = vmax.f32 %v665, 0.0
        %v732 = vmax.f32 %v667, 0.0
        %v733 = vld [vmem:[%s3] sm:$0xff]
        %v734 = vld [vmem:[%s3 + $0x8] sm:$0xff]
        %v735 = vld [vmem:[%s3 + $0x10] sm:$0xff]
        %v736 = vld [vmem:[%s3 + $0x18] sm:$0xff]
        %v737 = vld [vmem:[%s3 + $0x20] sm:$0xff]
        %v738 = vld [vmem:[%s3 + $0x28] sm:$0xff]
        %v739 = vld [vmem:[%s3 + $0x30] sm:$0xff]
        %v740 = vld [vmem:[%s3 + $0x38] sm:$0xff]
        %v741 = vld [vmem:[%s3 + $0x40] sm:$0xff]
        %v742 = vld [vmem:[%s3 + $0x48] sm:$0xff]
        %v743 = vld [vmem:[%s3 + $0x50] sm:$0xff]
        %v744 = vld [vmem:[%s3 + $0x58] sm:$0xff]
        %v745 = vld [vmem:[%s3 + $0x60] sm:$0xff]
        %v746 = vld [vmem:[%s3 + $0x68] sm:$0xff]
        %v747 = vld [vmem:[%s3 + $0x70] sm:$0xff]
        %v748 = vld [vmem:[%s3 + $0x78] sm:$0xff]
        %v749 = vld [vmem:[%s3 + $0x80] sm:$0xff]
        %v750 = vld [vmem:[%s3 + $0x88] sm:$0xff]
        %v751 = vld [vmem:[%s3 + $0x90] sm:$0xff]
        %v752 = vld [vmem:[%s3 + $0x98] sm:$0xff]
        %v753 = vld [vmem:[%s3 + $0xa0] sm:$0xff]
        %v754 = vld [vmem:[%s3 + $0xa8] sm:$0xff]
        %v755 = vld [vmem:[%s3 + $0xb0] sm:$0xff]
        %v756 = vld [vmem:[%s3 + $0xb8] sm:$0xff]
        %v757 = vld [vmem:[%s3 + $0xc0] sm:$0xff]
        %v758 = vld [vmem:[%s3 + $0xc8] sm:$0xff]
        %v759 = vld [vmem:[%s3 + $0xd0] sm:$0xff]
        %v760 = vld [vmem:[%s3 + $0xd8] sm:$0xff]
        %v761 = vld [vmem:[%s3 + $0xe0] sm:$0xff]
        %v762 = vld [vmem:[%s3 + $0xe8] sm:$0xff]
        %v763 = vld [vmem:[%s3 + $0xf0] sm:$0xff]
        %v764 = vld [vmem:[%s3 + $0xf8] sm:$0xff]
        %v765 = vld [vmem:[%s4] sm:$0x1]
        %v767 = vlaneseq
        %v768 = vshrl.u32 %v767, 7
        %v769 = vsub.s32 0, %v768
        %v770 = vrot.slane %v765, %v769
        %772 = vmatprep.subr.mxu0 0.0
        %773 = vmatpush1.msra.mxu0 %v733
        %774 = vmatprep.subr.mxu0 0.0
        %775 = vmatpush1.msra.mxu0 %v734
        %776 = vmatprep.subr.mxu0 0.0
        %777 = vmatpush1.msra.mxu0 %v735
        %778 = vmatprep.subr.mxu0 0.0
        %779 = vmatpush1.msra.mxu0 %v736
        %780 = vmatprep.subr.mxu0 0.0
        %781 = vmatpush1.msra.mxu0 %v737
        %782 = vmatprep.subr.mxu0 0.0
        %783 = vmatpush1.msra.mxu0 %v738
        %784 = vmatprep.subr.mxu0 0.0
        %785 = vmatpush1.msra.mxu0 %v739
        %786 = vmatprep.subr.mxu0 0.0
        %787 = vmatpush1.msra.mxu0 %v740
        %788 = vmatprep.subr.mxu0 0.0
        %789 = vmatpush1.msra.mxu0 %v741
        %790 = vmatprep.subr.mxu0 0.0
        %791 = vmatpush1.msra.mxu0 %v742
        %792 = vmatprep.subr.mxu0 0.0
        %793 = vmatpush1.msra.mxu0 %v743
        %794 = vmatprep.subr.mxu0 0.0
        %795 = vmatpush1.msra.mxu0 %v744
        %796 = vmatprep.subr.mxu0 0.0
        %797 = vmatpush1.msra.mxu0 %v745
        %798 = vmatprep.subr.mxu0 0.0
        %799 = vmatpush1.msra.mxu0 %v746
        %800 = vmatprep.subr.mxu0 0.0
        %801 = vmatpush1.msra.mxu0 %v747
        %802 = vmatprep.subr.mxu0 0.0
        %803 = vmatpush1.msra.mxu0 %v748
        %804 = vmatprep.subr.mxu0 0.0
        %805 = vmatpush1.msra.mxu0 %v749
        %806 = vmatprep.subr.mxu0 0.0
        %807 = vmatpush1.msra.mxu0 %v750
        %808 = vmatprep.subr.mxu0 0.0
        %809 = vmatpush1.msra.mxu0 %v751
        %810 = vmatprep.subr.mxu0 0.0
        %811 = vmatpush1.msra.mxu0 %v752
        %812 = vmatprep.subr.mxu0 0.0
        %813 = vmatpush1.msra.mxu0 %v753
        %814 = vmatprep.subr.mxu0 0.0
        %815 = vmatpush1.msra.mxu0 %v754
        %816 = vmatprep.subr.mxu0 0.0
        %817 = vmatpush1.msra.mxu0 %v755
        %818 = vmatprep.subr.mxu0 0.0
        %819 = vmatpush1.msra.mxu0 %v756
        %820 = vmatprep.subr.mxu0 0.0
        %821 = vmatpush1.msra.mxu0 %v757
        %822 = vmatprep.subr.mxu0 0.0
        %823 = vmatpush1.msra.mxu0 %v758
        %824 = vmatprep.subr.mxu0 0.0
        %825 = vmatpush1.msra.mxu0 %v759
        %826 = vmatprep.subr.mxu0 0.0
        %827 = vmatpush1.msra.mxu0 %v760
        %828 = vmatprep.subr.mxu0 0.0
        %829 = vmatpush1.msra.mxu0 %v761
        %830 = vmatprep.subr.mxu0 0.0
        %831 = vmatpush1.msra.mxu0 %v762
        %832 = vmatprep.subr.mxu0 0.0
        %833 = vmatpush1.msra.mxu0 %v763
        %834 = vmatprep.subr.mxu0 0.0
        %835 = vmatpush1.msra.mxu0 %v764
        %836 = vmatprep.mubr.f32.mxu0 %v670
        %837 = vmatmul.mubr.f32.gmra.mrb[0].mxu0 %v669
        %v838 = vpop.f32.mrb[0].mxu0
        %v839 = vadd.f32 %v770, %v838
        %v840 = vpop.f32.mrb[0].mxu0
        %841 = vmatprep.mubr.f32.mxu0 %v672
        %842 = vmatmul.mubr.f32.gmra.mrb[0].mxu0 %v671
        %v843 = vpop.f32.mrb[0].mxu0
        %v844 = vadd.f32 %v770, %v843
        %v845 = vpop.f32.mrb[0].mxu0
        %846 = vmatprep.mubr.f32.mxu0 %v674
        %847 = vmatmul.mubr.f32.gmra.mrb[0].mxu0 %v673
        %v848 = vpop.f32.mrb[0].mxu0
        %v849 = vadd.f32 %v770, %v848
        %v850 = vpop.f32.mrb[0].mxu0
        %851 = vmatprep.mubr.f32.mxu0 %v676
        %852 = vmatmul.mubr.f32.gmra.mrb[0].mxu0 %v675
        %v853 = vpop.f32.mrb[0].mxu0
        %v854 = vadd.f32 %v770, %v853
        %v855 = vpop.f32.mrb[0].mxu0
        %856 = vmatprep.mubr.f32.mxu0 %v678
        %857 = vmatmul.mubr.f32.gmra.mrb[0].mxu0 %v677
        %v858 = vpop.f32.mrb[0].mxu0
        %v859 = vadd.f32 %v770, %v858
        %v860 = vpop.f32.mrb[0].mxu0
        %861 = vmatprep.mubr.f32.mxu0 %v680
        %862 = vmatmul.mubr.f32.gmra.mrb[0].mxu0 %v679
        %v863 = vpop.f32.mrb[0].mxu0
        %v864 = vadd.f32 %v770, %v863
        %v865 = vpop.f32.mrb[0].mxu0
        %866 = vmatprep.mubr.f32.mxu0 %v682
        %867 = vmatmul.mubr.f32.gmra.mrb[0].mxu0 %v681
        %v868 = vpop.f32.mrb[0].mxu0
        %v869 = vadd.f32 %v770, %v868
        %v870 = vpop.f32.mrb[0].mxu0
        %871 = vmatprep.mubr.f32.mxu0 %v684
        %872 = vmatmul.mubr.f32.gmra.mrb[0].mxu0 %v683
        %v873 = vpop.f32.mrb[0].mxu0
        %v874 = vadd.f32 %v770, %v873
        %v875 = vpop.f32.mrb[0].mxu0
        %876 = vmatprep.mubr.f32.mxu0 %v686
        %877 = vmatmul.mubr.f32.gmra.mrb[0].mxu0 %v685
        %v878 = vpop.f32.mrb[0].mxu0
        %v879 = vadd.f32 %v770, %v878
        %v880 = vpop.f32.mrb[0].mxu0
        %881 = vmatprep.mubr.f32.mxu0 %v688
        %882 = vmatmul.mubr.f32.gmra.mrb[0].mxu0 %v687
        %v883 = vpop.f32.mrb[0].mxu0
        %v884 = vadd.f32 %v770, %v883
        %v885 = vpop.f32.mrb[0].mxu0
        %886 = vmatprep.mubr.f32.mxu0 %v690
        %887 = vmatmul.mubr.f32.gmra.mrb[0].mxu0 %v689
        %v888 = vpop.f32.mrb[0].mxu0
        %v889 = vadd.f32 %v770, %v888
        %v890 = vpop.f32.mrb[0].mxu0
        %891 = vmatprep.mubr.f32.mxu0 %v692
        %892 = vmatmul.mubr.f32.gmra.mrb[0].mxu0 %v691
        %v893 = vpop.f32.mrb[0].mxu0
        %v894 = vadd.f32 %v770, %v893
        %v895 = vpop.f32.mrb[0].mxu0
        %896 = vmatprep.mubr.f32.mxu0 %v694
        %897 = vmatmul.mubr.f32.gmra.mrb[0].mxu0 %v693
        %v898 = vpop.f32.mrb[0].mxu0
        %v899 = vadd.f32 %v770, %v898
        %v900 = vpop.f32.mrb[0].mxu0
        %901 = vmatprep.mubr.f32.mxu0 %v696
        %902 = vmatmul.mubr.f32.gmra.mrb[0].mxu0 %v695
        %v903 = vpop.f32.mrb[0].mxu0
        %v904 = vadd.f32 %v770, %v903
        %v905 = vpop.f32.mrb[0].mxu0
        %906 = vmatprep.mubr.f32.mxu0 %v698
        %907 = vmatmul.mubr.f32.gmra.mrb[0].mxu0 %v697
        %v908 = vpop.f32.mrb[0].mxu0
        %v909 = vadd.f32 %v770, %v908
        %v910 = vpop.f32.mrb[0].mxu0
        %911 = vmatprep.mubr.f32.mxu0 %v700
        %912 = vmatmul.mubr.f32.gmra.mrb[0].mxu0 %v699
        %v913 = vpop.f32.mrb[0].mxu0
        %v914 = vadd.f32 %v770, %v913
        %v915 = vpop.f32.mrb[0].mxu0
        %916 = vmatprep.mubr.f32.mxu0 %v702
        %917 = vmatmul.mubr.f32.gmra.mrb[0].mxu0 %v701
        %v918 = vpop.f32.mrb[0].mxu0
        %v919 = vadd.f32 %v770, %v918
        %v920 = vpop.f32.mrb[0].mxu0
        %921 = vmatprep.mubr.f32.mxu0 %v704
        %922 = vmatmul.mubr.f32.gmra.mrb[0].mxu0 %v703
        %v923 = vpop.f32.mrb[0].mxu0
        %v924 = vadd.f32 %v770, %v923
        %v925 = vpop.f32.mrb[0].mxu0
        %926 = vmatprep.mubr.f32.mxu0 %v706
        %927 = vmatmul.mubr.f32.gmra.mrb[0].mxu0 %v705
        %v928 = vpop.f32.mrb[0].mxu0
        %v929 = vadd.f32 %v770, %v928
        %v930 = vpop.f32.mrb[0].mxu0
        %931 = vmatprep.mubr.f32.mxu0 %v708
        %932 = vmatmul.mubr.f32.gmra.mrb[0].mxu0 %v707
        %v933 = vpop.f32.mrb[0].mxu0
        %v934 = vadd.f32 %v770, %v933
        %v935 = vpop.f32.mrb[0].mxu0
        %936 = vmatprep.mubr.f32.mxu0 %v710
        %937 = vmatmul.mubr.f32.gmra.mrb[0].mxu0 %v709
        %v938 = vpop.f32.mrb[0].mxu0
        %v939 = vadd.f32 %v770, %v938
        %v940 = vpop.f32.mrb[0].mxu0
        %941 = vmatprep.mubr.f32.mxu0 %v712
        %942 = vmatmul.mubr.f32.gmra.mrb[0].mxu0 %v711
        %v943 = vpop.f32.mrb[0].mxu0
        %v944 = vadd.f32 %v770, %v943
        %v945 = vpop.f32.mrb[0].mxu0
        %946 = vmatprep.mubr.f32.mxu0 %v714
        %947 = vmatmul.mubr.f32.gmra.mrb[0].mxu0 %v713
        %v948 = vpop.f32.mrb[0].mxu0
        %v949 = vadd.f32 %v770, %v948
        %v950 = vpop.f32.mrb[0].mxu0
        %951 = vmatprep.mubr.f32.mxu0 %v716
        %952 = vmatmul.mubr.f32.gmra.mrb[0].mxu0 %v715
        %v953 = vpop.f32.mrb[0].mxu0
        %v954 = vadd.f32 %v770, %v953
        %v955 = vpop.f32.mrb[0].mxu0
        %956 = vmatprep.mubr.f32.mxu0 %v718
        %957 = vmatmul.mubr.f32.gmra.mrb[0].mxu0 %v717
        %v958 = vpop.f32.mrb[0].mxu0
        %v959 = vadd.f32 %v770, %v958
        %v960 = vpop.f32.mrb[0].mxu0
        %961 = vmatprep.mubr.f32.mxu0 %v720
        %962 = vmatmul.mubr.f32.gmra.mrb[0].mxu0 %v719
        %v963 = vpop.f32.mrb[0].mxu0
        %v964 = vadd.f32 %v770, %v963
        %v965 = vpop.f32.mrb[0].mxu0
        %966 = vmatprep.mubr.f32.mxu0 %v722
        %967 = vmatmul.mubr.f32.gmra.mrb[0].mxu0 %v721
        %v968 = vpop.f32.mrb[0].mxu0
        %v969 = vadd.f32 %v770, %v968
        %v970 = vpop.f32.mrb[0].mxu0
        %971 = vmatprep.mubr.f32.mxu0 %v724
        %972 = vmatmul.mubr.f32.gmra.mrb[0].mxu0 %v723
        %v973 = vpop.f32.mrb[0].mxu0
        %v974 = vadd.f32 %v770, %v973
        %v975 = vpop.f32.mrb[0].mxu0
        %976 = vmatprep.mubr.f32.mxu0 %v726
        %977 = vmatmul.mubr.f32.gmra.mrb[0].mxu0 %v725
        %v978 = vpop.f32.mrb[0].mxu0
        %v979 = vadd.f32 %v770, %v978
        %v980 = vpop.f32.mrb[0].mxu0
        %981 = vmatprep.mubr.f32.mxu0 %v728
        %982 = vmatmul.mubr.f32.gmra.mrb[0].mxu0 %v727
        %v983 = vpop.f32.mrb[0].mxu0
        %v984 = vadd.f32 %v770, %v983
        %v985 = vpop.f32.mrb[0].mxu0
        %986 = vmatprep.mubr.f32.mxu0 %v730
        %987 = vmatmul.mubr.f32.gmra.mrb[0].mxu0 %v729
        %v988 = vpop.f32.mrb[0].mxu0
        %v989 = vadd.f32 %v770, %v988
        %v990 = vpop.f32.mrb[0].mxu0
        %991 = vmatprep.mubr.f32.mxu0 %v732
        %992 = vmatmul.mubr.f32.gmra.mrb[0].mxu0 %v731
        %v993 = vpop.f32.mrb[0].mxu0
        %v994 = vadd.f32 %v770, %v993
        %v995 = vpop.f32.mrb[0].mxu0
        %996 = vdwg.mxu0
        %v997 = vmax.f32 %v839, 0.0
        %v998 = vmax.f32 %v844, 0.0
        %v999 = vmax.f32 %v849, 0.0
        %v1000 = vmax.f32 %v854, 0.0
        %v1001 = vmax.f32 %v859, 0.0
        %v1002 = vmax.f32 %v864, 0.0
        %v1003 = vmax.f32 %v869, 0.0
        %v1004 = vmax.f32 %v874, 0.0
        %v1005 = vmax.f32 %v879, 0.0
        %v1006 = vmax.f32 %v884, 0.0
        %v1007 = vmax.f32 %v889, 0.0
        %v1008 = vmax.f32 %v894, 0.0
        %v1009 = vmax.f32 %v899, 0.0
        %v1010 = vmax.f32 %v904, 0.0
        %v1011 = vmax.f32 %v909, 0.0
        %v1012 = vmax.f32 %v914, 0.0
        %v1013 = vmax.f32 %v919, 0.0
        %v1014 = vmax.f32 %v924, 0.0
        %v1015 = vmax.f32 %v929, 0.0
        %v1016 = vmax.f32 %v934, 0.0
        %v1017 = vmax.f32 %v939, 0.0
        %v1018 = vmax.f32 %v944, 0.0
        %v1019 = vmax.f32 %v949, 0.0
        %v1020 = vmax.f32 %v954, 0.0
        %v1021 = vmax.f32 %v959, 0.0
        %v1022 = vmax.f32 %v964, 0.0
        %v1023 = vmax.f32 %v969, 0.0
        %v1024 = vmax.f32 %v974, 0.0
        %v1025 = vmax.f32 %v979, 0.0
        %v1026 = vmax.f32 %v984, 0.0
        %v1027 = vmax.f32 %v989, 0.0
        %v1028 = vmax.f32 %v994, 0.0
        %v1029 = vld [vmem:[%s5] sm:$0xff]
        %v1030 = vld [vmem:[%s5 + $0x8] sm:$0xff]
        %v1031 = vld [vmem:[%s5 + $0x10] sm:$0xff]
        %v1032 = vld [vmem:[%s5 + $0x18] sm:$0xff]
        %v1033 = vld [vmem:[%s5 + $0x20] sm:$0xff]
        %v1034 = vld [vmem:[%s5 + $0x28] sm:$0xff]
        %v1035 = vld [vmem:[%s5 + $0x30] sm:$0xff]
        %v1036 = vld [vmem:[%s5 + $0x38] sm:$0xff]
        %v1037 = vld [vmem:[%s5 + $0x40] sm:$0xff]
        %v1038 = vld [vmem:[%s5 + $0x48] sm:$0xff]
        %v1039 = vld [vmem:[%s5 + $0x50] sm:$0xff]
        %v1040 = vld [vmem:[%s5 + $0x58] sm:$0xff]
        %v1041 = vld [vmem:[%s5 + $0x60] sm:$0xff]
        %v1042 = vld [vmem:[%s5 + $0x68] sm:$0xff]
        %v1043 = vld [vmem:[%s5 + $0x70] sm:$0xff]
        %v1044 = vld [vmem:[%s5 + $0x78] sm:$0xff]
        %v1045 = vld [vmem:[%s6] sm:$0x1]
        %v1047 = vlaneseq
        %v1048 = vshrl.u32 %v1047, 7
        %v1049 = vsub.s32 0, %v1048
        %v1050 = vrot.slane %v1045, %v1049
        %1052 = vmatprep.subr.mxu0 0.0
        %1053 = vmatpush1.msra.mxu0 %v1029
        %1054 = vmatprep.subr.mxu0 0.0
        %1055 = vmatpush1.msra.mxu0 %v1030
        %1056 = vmatprep.subr.mxu0 0.0
        %1057 = vmatpush1.msra.mxu0 %v1031
        %1058 = vmatprep.subr.mxu0 0.0
        %1059 = vmatpush1.msra.mxu0 %v1032
        %1060 = vmatprep.subr.mxu0 0.0
        %1061 = vmatpush1.msra.mxu0 %v1033
        %1062 = vmatprep.subr.mxu0 0.0
        %1063 = vmatpush1.msra.mxu0 %v1034
        %1064 = vmatprep.subr.mxu0 0.0
        %1065 = vmatpush1.msra.mxu0 %v1035
        %1066 = vmatprep.subr.mxu0 0.0
        %1067 = vmatpush1.msra.mxu0 %v1036
        %1068 = vmatprep.subr.mxu0 0.0
        %1069 = vmatpush1.msra.mxu0 %v1037
        %1070 = vmatprep.subr.mxu0 0.0
        %1071 = vmatpush1.msra.mxu0 %v1038
        %1072 = vmatprep.subr.mxu0 0.0
        %1073 = vmatpush1.msra.mxu0 %v1039
        %1074 = vmatprep.subr.mxu0 0.0
        %1075 = vmatpush1.msra.mxu0 %v1040
        %1076 = vmatprep.subr.mxu0 0.0
        %1077 = vmatpush1.msra.mxu0 %v1041
        %1078 = vmatprep.subr.mxu0 0.0
        %1079 = vmatpush1.msra.mxu0 %v1042
        %1080 = vmatprep.subr.mxu0 0.0
        %1081 = vmatpush1.msra.mxu0 %v1043
        %1082 = vmatprep.subr.mxu0 0.0
        %1083 = vmatpush1.msra.mxu0 %v1044
        %1084 = vmatprep.subr.mxu0 0.0
        %1085 = vmatpush1.msra.mxu0 0.0
        %1086 = vmatprep.subr.mxu0 0.0
        %1087 = vmatpush1.msra.mxu0 0.0
        %1088 = vmatprep.subr.mxu0 0.0
        %1089 = vmatpush1.msra.mxu0 0.0
        %1090 = vmatprep.subr.mxu0 0.0
        %1091 = vmatpush1.msra.mxu0 0.0
        %1092 = vmatprep.subr.mxu0 0.0
        %1093 = vmatpush1.msra.mxu0 0.0
        %1094 = vmatprep.subr.mxu0 0.0
        %1095 = vmatpush1.msra.mxu0 0.0
        %1096 = vmatprep.subr.mxu0 0.0
        %1097 = vmatpush1.msra.mxu0 0.0
        %1098 = vmatprep.subr.mxu0 0.0
        %1099 = vmatpush1.msra.mxu0 0.0
        %1100 = vmatprep.subr.mxu0 0.0
        %1101 = vmatpush1.msra.mxu0 0.0
        %1102 = vmatprep.subr.mxu0 0.0
        %1103 = vmatpush1.msra.mxu0 0.0
        %1104 = vmatprep.subr.mxu0 0.0
        %1105 = vmatpush1.msra.mxu0 0.0
        %1106 = vmatprep.subr.mxu0 0.0
        %1107 = vmatpush1.msra.mxu0 0.0
        %1108 = vmatprep.subr.mxu0 0.0
        %1109 = vmatpush1.msra.mxu0 0.0
        %1110 = vmatprep.subr.mxu0 0.0
        %1111 = vmatpush1.msra.mxu0 0.0
        %1112 = vmatprep.subr.mxu0 0.0
        %1113 = vmatpush1.msra.mxu0 0.0
        %1114 = vmatprep.subr.mxu0 0.0
        %1115 = vmatpush1.msra.mxu0 0.0
        %1116 = vmatprep.mubr.f32.mxu0 0.0
        %1117 = vmatmul.mubr.f32.gmra.mrb[0].mxu0 %v997
        %v1118 = vpop.f32.mrb[0].mxu0
        %v1119 = vadd.f32 %v1050, %v1118
        %v1120 = vpop.f32.mrb[0].mxu0
        %1121 = vmatprep.mubr.f32.mxu0 0.0
        %1122 = vmatmul.mubr.f32.gmra.mrb[0].mxu0 %v998
        %v1123 = vpop.f32.mrb[0].mxu0
        %v1124 = vadd.f32 %v1050, %v1123
        %v1125 = vpop.f32.mrb[0].mxu0
        %1126 = vmatprep.mubr.f32.mxu0 0.0
        %1127 = vmatmul.mubr.f32.gmra.mrb[0].mxu0 %v999
        %v1128 = vpop.f32.mrb[0].mxu0
        %v1129 = vadd.f32 %v1050, %v1128
        %v1130 = vpop.f32.mrb[0].mxu0
        %1131 = vmatprep.mubr.f32.mxu0 0.0
        %1132 = vmatmul.mubr.f32.gmra.mrb[0].mxu0 %v1000
        %v1133 = vpop.f32.mrb[0].mxu0
        %v1134 = vadd.f32 %v1050, %v1133
        %v1135 = vpop.f32.mrb[0].mxu0
        %1136 = vmatprep.mubr.f32.mxu0 0.0
        %1137 = vmatmul.mubr.f32.gmra.mrb[0].mxu0 %v1001
        %v1138 = vpop.f32.mrb[0].mxu0
        %v1139 = vadd.f32 %v1050, %v1138
        %v1140 = vpop.f32.mrb[0].mxu0
        %1141 = vmatprep.mubr.f32.mxu0 0.0
        %1142 = vmatmul.mubr.f32.gmra.mrb[0].mxu0 %v1002
        %v1143 = vpop.f32.mrb[0].mxu0
        %v1144 = vadd.f32 %v1050, %v1143
        %v1145 = vpop.f32.mrb[0].mxu0
        %1146 = vmatprep.mubr.f32.mxu0 0.0
        %1147 = vmatmul.mubr.f32.gmra.mrb[0].mxu0 %v1003
        %v1148 = vpop.f32.mrb[0].mxu0
        %v1149 = vadd.f32 %v1050, %v1148
        %v1150 = vpop.f32.mrb[0].mxu0
        %1151 = vmatprep.mubr.f32.mxu0 0.0
        %1152 = vmatmul.mubr.f32.gmra.mrb[0].mxu0 %v1004
        %v1153 = vpop.f32.mrb[0].mxu0
        %v1154 = vadd.f32 %v1050, %v1153
        %v1155 = vpop.f32.mrb[0].mxu0
        %1156 = vmatprep.mubr.f32.mxu0 0.0
        %1157 = vmatmul.mubr.f32.gmra.mrb[0].mxu0 %v1005
        %v1158 = vpop.f32.mrb[0].mxu0
        %v1159 = vadd.f32 %v1050, %v1158
        %v1160 = vpop.f32.mrb[0].mxu0
        %1161 = vmatprep.mubr.f32.mxu0 0.0
        %1162 = vmatmul.mubr.f32.gmra.mrb[0].mxu0 %v1006
        %v1163 = vpop.f32.mrb[0].mxu0
        %v1164 = vadd.f32 %v1050, %v1163
        %v1165 = vpop.f32.mrb[0].mxu0
        %1166 = vmatprep.mubr.f32.mxu0 0.0
        %1167 = vmatmul.mubr.f32.gmra.mrb[0].mxu0 %v1007
        %v1168 = vpop.f32.mrb[0].mxu0
        %v1169 = vadd.f32 %v1050, %v1168
        %v1170 = vpop.f32.mrb[0].mxu0
        %1171 = vmatprep.mubr.f32.mxu0 0.0
        %1172 = vmatmul.mubr.f32.gmra.mrb[0].mxu0 %v1008
        %v1173 = vpop.f32.mrb[0].mxu0
        %v1174 = vadd.f32 %v1050, %v1173
        %v1175 = vpop.f32.mrb[0].mxu0
        %1176 = vmatprep.mubr.f32.mxu0 0.0
        %1177 = vmatmul.mubr.f32.gmra.mrb[0].mxu0 %v1009
        %v1178 = vpop.f32.mrb[0].mxu0
        %v1179 = vadd.f32 %v1050, %v1178
        %v1180 = vpop.f32.mrb[0].mxu0
        %1181 = vmatprep.mubr.f32.mxu0 0.0
        %1182 = vmatmul.mubr.f32.gmra.mrb[0].mxu0 %v1010
        %v1183 = vpop.f32.mrb[0].mxu0
        %v1184 = vadd.f32 %v1050, %v1183
        %v1185 = vpop.f32.mrb[0].mxu0
        %1186 = vmatprep.mubr.f32.mxu0 0.0
        %1187 = vmatmul.mubr.f32.gmra.mrb[0].mxu0 %v1011
        %v1188 = vpop.f32.mrb[0].mxu0
        %v1189 = vadd.f32 %v1050, %v1188
        %v1190 = vpop.f32.mrb[0].mxu0
        %1191 = vmatprep.mubr.f32.mxu0 0.0
        %1192 = vmatmul.mubr.f32.gmra.mrb[0].mxu0 %v1012
        %v1193 = vpop.f32.mrb[0].mxu0
        %v1194 = vadd.f32 %v1050, %v1193
        %v1195 = vpop.f32.mrb[0].mxu0
        %1196 = vmatprep.mubr.f32.mxu0 0.0
        %1197 = vmatmul.mubr.f32.gmra.mrb[0].mxu0 %v1013
        %v1198 = vpop.f32.mrb[0].mxu0
        %v1199 = vadd.f32 %v1050, %v1198
        %v1200 = vpop.f32.mrb[0].mxu0
        %1201 = vmatprep.mubr.f32.mxu0 0.0
        %1202 = vmatmul.mubr.f32.gmra.mrb[0].mxu0 %v1014
        %v1203 = vpop.f32.mrb[0].mxu0
        %v1204 = vadd.f32 %v1050, %v1203
        %v1205 = vpop.f32.mrb[0].mxu0
        %1206 = vmatprep.mubr.f32.mxu0 0.0
        %1207 = vmatmul.mubr.f32.gmra.mrb[0].mxu0 %v1015
        %v1208 = vpop.f32.mrb[0].mxu0
        %v1209 = vadd.f32 %v1050, %v1208
        %v1210 = vpop.f32.mrb[0].mxu0
        %1211 = vmatprep.mubr.f32.mxu0 0.0
        %1212 = vmatmul.mubr.f32.gmra.mrb[0].mxu0 %v1016
        %v1213 = vpop.f32.mrb[0].mxu0
        %v1214 = vadd.f32 %v1050, %v1213
        %v1215 = vpop.f32.mrb[0].mxu0
        %1216 = vmatprep.mubr.f32.mxu0 0.0
        %1217 = vmatmul.mubr.f32.gmra.mrb[0].mxu0 %v1017
        %v1218 = vpop.f32.mrb[0].mxu0
        %v1219 = vadd.f32 %v1050, %v1218
        %v1220 = vpop.f32.mrb[0].mxu0
        %1221 = vmatprep.mubr.f32.mxu0 0.0
        %1222 = vmatmul.mubr.f32.gmra.mrb[0].mxu0 %v1018
        %v1223 = vpop.f32.mrb[0].mxu0
        %v1224 = vadd.f32 %v1050, %v1223
        %v1225 = vpop.f32.mrb[0].mxu0
        %1226 = vmatprep.mubr.f32.mxu0 0.0
        %1227 = vmatmul.mubr.f32.gmra.mrb[0].mxu0 %v1019
        %v1228 = vpop.f32.mrb[0].mxu0
        %v1229 = vadd.f32 %v1050, %v1228
        %v1230 = vpop.f32.mrb[0].mxu0
        %1231 = vmatprep.mubr.f32.mxu0 0.0
        %1232 = vmatmul.mubr.f32.gmra.mrb[0].mxu0 %v1020
        %v1233 = vpop.f32.mrb[0].mxu0
        %v1234 = vadd.f32 %v1050, %v1233
        %v1235 = vpop.f32.mrb[0].mxu0
        %1236 = vmatprep.mubr.f32.mxu0 0.0
        %1237 = vmatmul.mubr.f32.gmra.mrb[0].mxu0 %v1021
        %v1238 = vpop.f32.mrb[0].mxu0
        %v1239 = vadd.f32 %v1050, %v1238
        %v1240 = vpop.f32.mrb[0].mxu0
        %1241 = vmatprep.mubr.f32.mxu0 0.0
        %1242 = vmatmul.mubr.f32.gmra.mrb[0].mxu0 %v1022
        %v1243 = vpop.f32.mrb[0].mxu0
        %v1244 = vadd.f32 %v1050, %v1243
        %v1245 = vpop.f32.mrb[0].mxu0
        %1246 = vmatprep.mubr.f32.mxu0 0.0
        %1247 = vmatmul.mubr.f32.gmra.mrb[0].mxu0 %v1023
        %v1248 = vpop.f32.mrb[0].mxu0
        %v1249 = vadd.f32 %v1050, %v1248
        %v1250 = vpop.f32.mrb[0].mxu0
        %1251 = vmatprep.mubr.f32.mxu0 0.0
        %1252 = vmatmul.mubr.f32.gmra.mrb[0].mxu0 %v1024
        %v1253 = vpop.f32.mrb[0].mxu0
        %v1254 = vadd.f32 %v1050, %v1253
        %v1255 = vpop.f32.mrb[0].mxu0
        %1256 = vmatprep.mubr.f32.mxu0 0.0
        %1257 = vmatmul.mubr.f32.gmra.mrb[0].mxu0 %v1025
        %v1258 = vpop.f32.mrb[0].mxu0
        %v1259 = vadd.f32 %v1050, %v1258
        %v1260 = vpop.f32.mrb[0].mxu0
        %1261 = vmatprep.mubr.f32.mxu0 0.0
        %1262 = vmatmul.mubr.f32.gmra.mrb[0].mxu0 %v1026
        %v1263 = vpop.f32.mrb[0].mxu0
        %v1264 = vadd.f32 %v1050, %v1263
        %v1265 = vpop.f32.mrb[0].mxu0
        %1266 = vmatprep.mubr.f32.mxu0 0.0
        %1267 = vmatmul.mubr.f32.gmra.mrb[0].mxu0 %v1027
        %v1268 = vpop.f32.mrb[0].mxu0
        %v1269 = vadd.f32 %v1050, %v1268
        %v1270 = vpop.f32.mrb[0].mxu0
        %1271 = vmatprep.mubr.f32.mxu0 0.0
        %1272 = vmatmul.mubr.f32.gmra.mrb[0].mxu0 %v1028
        %v1273 = vpop.f32.mrb[0].mxu0
        %v1274 = vadd.f32 %v1050, %v1273
        %v1275 = vpop.f32.mrb[0].mxu0
        %1276 = vdwg.mxu0
        %v1277 = vmax.f32 %v1119, 0.0
        %v1278 = vmax.f32 %v1124, 0.0
        %v1279 = vmax.f32 %v1129, 0.0
        %v1280 = vmax.f32 %v1134, 0.0
        %v1281 = vmax.f32 %v1139, 0.0
        %v1282 = vmax.f32 %v1144, 0.0
        %v1283 = vmax.f32 %v1149, 0.0
        %v1284 = vmax.f32 %v1154, 0.0
        %v1285 = vmax.f32 %v1159, 0.0
        %v1286 = vmax.f32 %v1164, 0.0
        %v1287 = vmax.f32 %v1169, 0.0
        %v1288 = vmax.f32 %v1174, 0.0
        %v1289 = vmax.f32 %v1179, 0.0
        %v1290 = vmax.f32 %v1184, 0.0
        %v1291 = vmax.f32 %v1189, 0.0
        %v1292 = vmax.f32 %v1194, 0.0
        %v1293 = vmax.f32 %v1199, 0.0
        %v1294 = vmax.f32 %v1204, 0.0
        %v1295 = vmax.f32 %v1209, 0.0
        %v1296 = vmax.f32 %v1214, 0.0
        %v1297 = vmax.f32 %v1219, 0.0
        %v1298 = vmax.f32 %v1224, 0.0
        %v1299 = vmax.f32 %v1229, 0.0
        %v1300 = vmax.f32 %v1234, 0.0
        %v1301 = vmax.f32 %v1239, 0.0
        %v1302 = vmax.f32 %v1244, 0.0
        %v1303 = vmax.f32 %v1249, 0.0
        %v1304 = vmax.f32 %v1254, 0.0
        %v1305 = vmax.f32 %v1259, 0.0
        %v1306 = vmax.f32 %v1264, 0.0
        %v1307 = vmax.f32 %v1269, 0.0
        %v1308 = vmax.f32 %v1274, 0.0
        %v1309 = vld [vmem:[%s7] sm:$0x1]
        %v1310 = vld [vmem:[#allocation2] sm:$0x1]
        %1312 = vset.pattern.permute.xlu0 0
        %1313 = vperm.xlu0 %1312, %v1310
        %v1314 = vpop.permute.xlu0 %1313
        %v1316 = vlaneseq
        %v1317 = vshrl.u32 %v1316, 7
        %v1318 = vsub.s32 0, %v1317
        %v1319 = vrot.slane %v1314, %v1318
        %vm1320 = vcmask 523264
        %v1322 = vsel %vm1320, %v1309, 0
        %v1325 = vsel %vm1320, %v1277, 0
        %v1328 = vsel %vm1320, %v1278, 0
        %v1331 = vsel %vm1320, %v1279, 0
        %v1334 = vsel %vm1320, %v1280, 0
        %v1337 = vsel %vm1320, %v1281, 0
        %v1340 = vsel %vm1320, %v1282, 0
        %v1343 = vsel %vm1320, %v1283, 0
        %v1346 = vsel %vm1320, %v1284, 0
        %v1349 = vsel %vm1320, %v1285, 0
        %v1352 = vsel %vm1320, %v1286, 0
        %v1355 = vsel %vm1320, %v1287, 0
        %v1358 = vsel %vm1320, %v1288, 0
        %v1361 = vsel %vm1320, %v1289, 0
        %v1364 = vsel %vm1320, %v1290, 0
        %v1367 = vsel %vm1320, %v1291, 0
        %v1370 = vsel %vm1320, %v1292, 0
        %v1373 = vsel %vm1320, %v1293, 0
        %v1376 = vsel %vm1320, %v1294, 0
        %v1379 = vsel %vm1320, %v1295, 0
        %v1382 = vsel %vm1320, %v1296, 0
        %v1385 = vsel %vm1320, %v1297, 0
        %v1388 = vsel %vm1320, %v1298, 0
        %v1391 = vsel %vm1320, %v1299, 0
        %v1394 = vsel %vm1320, %v1300, 0
        %v1397 = vsel %vm1320, %v1301, 0
        %v1400 = vsel %vm1320, %v1302, 0
        %v1403 = vsel %vm1320, %v1303, 0
        %v1406 = vsel %vm1320, %v1304, 0
        %v1409 = vsel %vm1320, %v1305, 0
        %v1412 = vsel %vm1320, %v1306, 0
        %v1415 = vsel %vm1320, %v1307, 0
        %v1418 = vsel %vm1320, %v1308, 0
        %1420 = vmatprep.subr.mxu0 0.0
        %1421 = vmatpush1.xpose.msra.mxu0 %v1325
        %1422 = vmatprep.subr.mxu0 0.0
        %1423 = vmatpush1.xpose.msra.mxu0 %v1328
        %1424 = vmatprep.subr.mxu0 0.0
        %1425 = vmatpush1.xpose.msra.mxu0 %v1331
        %1426 = vmatprep.subr.mxu0 0.0
        %1427 = vmatpush1.xpose.msra.mxu0 %v1334
        %1428 = vmatprep.subr.mxu0 0.0
        %1429 = vmatpush1.xpose.msra.mxu0 %v1337
        %1430 = vmatprep.subr.mxu0 0.0
        %1431 = vmatpush1.xpose.msra.mxu0 %v1340
        %1432 = vmatprep.subr.mxu0 0.0
        %1433 = vmatpush1.xpose.msra.mxu0 %v1343
        %1434 = vmatprep.subr.mxu0 0.0
        %1435 = vmatpush1.xpose.msra.mxu0 %v1346
        %1436 = vmatprep.subr.mxu0 0.0
        %1437 = vmatpush1.xpose.msra.mxu0 %v1349
        %1438 = vmatprep.subr.mxu0 0.0
        %1439 = vmatpush1.xpose.msra.mxu0 %v1352
        %1440 = vmatprep.subr.mxu0 0.0
        %1441 = vmatpush1.xpose.msra.mxu0 %v1355
        %1442 = vmatprep.subr.mxu0 0.0
        %1443 = vmatpush1.xpose.msra.mxu0 %v1358
        %1444 = vmatprep.subr.mxu0 0.0
        %1445 = vmatpush1.xpose.msra.mxu0 %v1361
        %1446 = vmatprep.subr.mxu0 0.0
        %1447 = vmatpush1.xpose.msra.mxu0 %v1364
        %1448 = vmatprep.subr.mxu0 0.0
        %1449 = vmatpush1.xpose.msra.mxu0 %v1367
        %1450 = vmatprep.subr.mxu0 0.0
        %1451 = vmatpush1.xpose.msra.mxu0 %v1370
        %1452 = vmatprep.subr.mxu0 0.0
        %1453 = vmatpush1.xpose.msra.mxu0 %v1373
        %1454 = vmatprep.subr.mxu0 0.0
        %1455 = vmatpush1.xpose.msra.mxu0 %v1376
        %1456 = vmatprep.subr.mxu0 0.0
        %1457 = vmatpush1.xpose.msra.mxu0 %v1379
        %1458 = vmatprep.subr.mxu0 0.0
        %1459 = vmatpush1.xpose.msra.mxu0 %v1382
        %1460 = vmatprep.subr.mxu0 0.0
        %1461 = vmatpush1.xpose.msra.mxu0 %v1385
        %1462 = vmatprep.subr.mxu0 0.0
        %1463 = vmatpush1.xpose.msra.mxu0 %v1388
        %1464 = vmatprep.subr.mxu0 0.0
        %1465 = vmatpush1.xpose.msra.mxu0 %v1391
        %1466 = vmatprep.subr.mxu0 0.0
        %1467 = vmatpush1.xpose.msra.mxu0 %v1394
        %1468 = vmatprep.subr.mxu0 0.0
        %1469 = vmatpush1.xpose.msra.mxu0 %v1397
        %1470 = vmatprep.subr.mxu0 0.0
        %1471 = vmatpush1.xpose.msra.mxu0 %v1400
        %1472 = vmatprep.subr.mxu0 0.0
        %1473 = vmatpush1.xpose.msra.mxu0 %v1403
        %1474 = vmatprep.subr.mxu0 0.0
        %1475 = vmatpush1.xpose.msra.mxu0 %v1406
        %1476 = vmatprep.subr.mxu0 0.0
        %1477 = vmatpush1.xpose.msra.mxu0 %v1409
        %1478 = vmatprep.subr.mxu0 0.0
        %1479 = vmatpush1.xpose.msra.mxu0 %v1412
        %1480 = vmatprep.subr.mxu0 0.0
        %1481 = vmatpush1.xpose.msra.mxu0 %v1415
        %1482 = vmatprep.subr.mxu0 0.0
        %1483 = vmatpush1.xpose.msra.mxu0 %v1418
        %1484 = vmatprep.mubr.f32.mxu0 0.0
        %1485 = vmatmul.mubr.f32.gmra.mrb[0].mxu0 %v1322
        %v1486 = vpop.f32.mrb[0].mxu0
        %v1487 = vadd.f32 %v1319, %v1486
        %v1488 = vpop.f32.mrb[0].mxu0
        %v1489 = vadd.f32 %v1319, %v1488
        %1490 = vdwg.mxu0
        %v1491 = vsub.f32 0.0, %v1487
        %v1492 = vsub.f32 0.0, %v1489
        %v1493 = vmul.f32 %v1491, 1.442695
        %v1494 = vpow.pop %v1493
        %v1495 = vmul.f32 %v1492, 1.442695
        %v1496 = vpow.pop %v1495
        %v1497 = vadd.f32 %v1494, 1.0
        %v1498 = vadd.f32 %v1496, 1.0
        %v1499 = vrcp.pop %v1497
        %v1500 = vmul.f32 1.0, %v1499
        %v1501 = vrcp.pop %v1498
        %v1502 = vmul.f32 1.0, %v1501
        %v1505 = vcombine.low %v1500, %v1502
        %v1507 = vunpack.c.l.s4 1966171168
        %v1508 = vunpack.c.0.s8 %v1507
        %v1509 = vlaneseq
        %v1510 = vshrl.u32 %v1509, 7
        %v1511 = vsub.s32 %v1508, %v1510
        %v1512 = vrot.slane %v1505, %v1511
        %v1514 = vunpack.c.l.s4 1966171168
        %v1515 = vunpack.c.0.s8 %v1514
        %v1516 = vlaneseq
        %v1517 = vshrl.u32 %v1516, 7
        %v1518 = vsub.s32 %v1515, %v1517
        %v1519 = vrot.slane %v1512, %v1518
        %v1521 = vlaneseq
        %vm1522 = vcmp.ge.s32.totalorder %v1521, 0
        %vm1523 = vcmp.lt.s32.totalorder %v1521, 256
        %vm1524 = vmand %vm1522, %vm1523
        %1525 = vst.msk [vmem:[%s328] sm:$0x3] %vm1524, %v1519
        %s1526 = sand.u32 %s227, 1
        %s1527 = scalar_lea.sflag [#allocation4], %s1526
        %s1528 = sand.u32 %s227, 1
        %s1529 = smul.addr %s1528, 2
        %s1530 = scalar_lea.vmem [#allocation3], %s1529
        // Predicated region
        $region57: #{fcnn_forward.1} parent=55 // pred_check
          %p1531 = pneg %p237
        $region58: #{fcnn_forward.1} parent=55 // pred_check_branch
          %1533 = sbr.rel (%p1531) target = $region60
        $region59: #{fcnn_forward.1} parent=55 // pred_region
          %s1534 = smul.u32 2, %s25
          %s1536 = ssub.s32 32, 32
          %1537 = vsyncadd %s1527, %s1536
          %s1538 = smul.addr %s1534, 16
          %s1539 = scalar_lea.hbm %s9, %s1538
          %s1541 = sshll.u32 %s1530, 4
          %s1542 = int_to_ptr.vmem [resolvable:$true] %s1541
          %1544 = dma.vmem_to_hbm [thread:$0]  %s1542, 32, %s1539, %s1527
        $region60: #{fcnn_forward.1} parent=55 // pred_fallthru
          _
      $region56: #{fcnn_forward.1} parent=5 // pred_fallthru
        _
      %p1545 = scmp.le.s32.totalorder 2, %s20
      // Predicated region
      $region61: #{fcnn_forward.1} parent=5 // pred_check
        %p1546 = pneg %p1545
      $region62: #{fcnn_forward.1} parent=5 // pred_check_branch
        %1548 = sbr.rel (%p1546) target = $region64
      $region63: #{fcnn_forward.1} parent=5 // pred_region
        %s1549 = ssub.s32 %s20, 2
        // Predicated region
        $region65: #{fcnn_forward.1} parent=63 // pred_check
          %p1550 = pneg %p243
        $region66: #{fcnn_forward.1} parent=63 // pred_check_branch
          %1552 = sbr.rel (%p1550) target = $region68
        $region67: #{fcnn_forward.1} parent=63 // pred_region
          %s1553 = sand.u32 %s228, 1
          %s1554 = scalar_lea.sflag [#allocation4], %s1553
          %s1555 = sand.u32 %s228, 1
          %s1556 = smul.addr %s1555, 2
          %s1557 = scalar_lea.vmem [#allocation3], %s1556
          %1558 = dma.done %s1554, 32
        $region68: #{fcnn_forward.1} parent=63 // pred_fallthru
          _
      $region64: #{fcnn_forward.1} parent=5 // pred_fallthru
        _
    $region6: #{fcnn_forward.1} parent=1 // loop_footer
      %s24 = sadd.s32 1, %s20
    $region7: #{fcnn_forward.1} parent=1 // loop_footer_branch
      %19 = sbr.rel target = $region3
    $region8: #{fcnn_forward.1} parent=1 // loop_exit
      _
    %1559 = vsyncpa [#allocation4], 1
    %s1560 = scalar_lea.sflag [#allocation4], 1
    %1561 = vsyncpa %s1560, 1

</llo_original>
